<compile_context>
chip_gen: v6e
topology: v6e:2x2x1
jax: 0.10.0
libtpu: 0.0.40
codegen_flags: <defaults>
</compile_context>

<pallas_src>
import math
import numpy as np
import jax
import jax.numpy as jnp
from jax.experimental import pallas as pl
from jax.experimental.pallas import tpu as pltpu


# -----------------------------------------------------------------------------
# Deterministic wavelet filter bank (== pywt.Wavelet('haar').dec_lo / dec_hi).
# TODO(synk): other pywt wavelets would need their dec_lo/dec_hi tables added
#             in-script; the matrix construction below handles any even-length
#             filter.
# -----------------------------------------------------------------------------
_HAAR_DEC_LO = [1.0 / math.sqrt(2.0), 1.0 / math.sqrt(2.0)]
_HAAR_DEC_HI = [-1.0 / math.sqrt(2.0), 1.0 / math.sqrt(2.0)]


def _idwt3d_matrices(depth, height, width, dtype=np.float32):
    """Faithful numpy port of IDWT_3D.get_matrix() (Haar filters)."""
    band_low = list(_HAAR_DEC_LO)
    band_high = list(_HAAR_DEC_HI)
    band_low.reverse()
    band_high.reverse()
    band_length = len(band_low)
    assert band_length % 2 == 0
    band_length_half = band_length // 2

    L1 = max(height, width)
    L = L1 // 2
    matrix_h = np.zeros((L, L1 + band_length - 2))
    matrix_g = np.zeros((L1 - L, L1 + band_length - 2))
    end = None if band_length_half == 1 else -band_length_half + 1

    index = 0
    for i in range(L):
        for j in range(band_length):
            matrix_h[i, index + j] = band_low[j]
        index += 2
    matrix_h_0 = matrix_h[0:height // 2, 0:height + band_length - 2]
    matrix_h_1 = matrix_h[0:width // 2, 0:width + band_length - 2]
    matrix_h_2 = matrix_h[0:depth // 2, 0:depth + band_length - 2]

    index = 0
    for i in range(L1 - L):
        for j in range(band_length):
            matrix_g[i, index + j] = band_high[j]
        index += 2
    matrix_g_0 = matrix_g[0:height - height // 2, 0:height + band_length - 2]
    matrix_g_1 = matrix_g[0:width - width // 2, 0:width + band_length - 2]
    matrix_g_2 = matrix_g[0:depth - depth // 2, 0:depth + band_length - 2]

    matrix_h_0 = matrix_h_0[:, band_length_half - 1:end]
    matrix_h_1 = matrix_h_1[:, band_length_half - 1:end]
    matrix_h_1 = np.transpose(matrix_h_1)
    matrix_h_2 = matrix_h_2[:, band_length_half - 1:end]
    matrix_g_0 = matrix_g_0[:, band_length_half - 1:end]
    matrix_g_1 = matrix_g_1[:, band_length_half - 1:end]
    matrix_g_1 = np.transpose(matrix_g_1)
    matrix_g_2 = matrix_g_2[:, band_length_half - 1:end]

    # matrix_low_0: (H/2, H)  matrix_low_1: (W, W/2)  matrix_low_2: (D/2, D)
    return (matrix_h_0.astype(dtype), matrix_h_1.astype(dtype),
            matrix_h_2.astype(dtype), matrix_g_0.astype(dtype),
            matrix_g_1.astype(dtype), matrix_g_2.astype(dtype))


def _fused_idwt_operators(depth, height, width):
    """Host-precomputed fused reconstruction operators.

    Returns:
      g_blocks: (4, H2*W2, H*W) float32.  Row-block j = kron(rh[b].T, rw[c])
                for (b, c) in [(L,L), (L,H), (H,L), (H,H)] -- matches the band
                ordering [*LL, *LH, *HL, *HH] within each D-group.
      rd_stack: (2, D, D2) float32 = [rd_L, rd_H].
    """
    (m_low_0, m_low_1, m_low_2,
     m_high_0, m_high_1, m_high_2) = _idwt3d_matrices(depth, height, width)
    rh = {'L': m_low_0.T, 'H': m_high_0.T}       # (H, H2)
    rw = {'L': m_low_1.T, 'H': m_high_1.T}       # (W2, W)
    rd = {'L': m_low_2.T, 'H': m_high_2.T}       # (D, D2)
    order = (('L', 'L'), ('L', 'H'), ('H', 'L'), ('H', 'H'))
    g_blocks = np.stack([np.kron(rh[b].T, rw[c]) for (b, c) in order], axis=0)
    rd_stack = np.stack([rd['L'], rd['H']], axis=0)
    return g_blocks.astype(np.float32), rd_stack.astype(np.float32)


# -----------------------------------------------------------------------------
# Pallas kernel: reconstruct TB full (D, H*W) slabs per grid step.
# -----------------------------------------------------------------------------
def _idwt3d_kernel(lll, llh, lhl, lhh, hll, hlh, hhl, hhh,
                   g_ref, rd_ref, out_ref):
    f32 = jnp.float32
    TB, D2, K = lll.shape          # K  = H2 * W2
    HW = g_ref.shape[2]            # HW = H * W = 4 * K
    D = rd_ref.shape[1]            # rd_ref: (2, D, D2)

    def hw_stage(b0, b1, b2, b3):
        # Fused H+W reconstruction: 4 accumulating MXU matmuls with
        # K = H2*W2 and N = H*W (lane-dense), no concatenations.
        acc = jnp.dot(b0[...].reshape(TB * D2, K).astype(f32), g_ref[0],
                      preferred_element_type=f32)
        acc = acc + jnp.dot(b1[...].reshape(TB * D2, K).astype(f32), g_ref[1],
                            preferred_element_type=f32)
        acc = acc + jnp.dot(b2[...].reshape(TB * D2, K).astype(f32), g_ref[2],
                            preferred_element_type=f32)
        acc = acc + jnp.dot(b3[...].reshape(TB * D2, K).astype(f32), g_ref[3],
                            preferred_element_type=f32)
        return acc.reshape(TB, D2, HW)

    b_lo = hw_stage(lll, llh, lhl, lhh)     # D-band = L  -> (TB, D2, H*W)
    b_hi = hw_stage(hll, hlh, hhl, hhh)     # D-band = H  -> (TB, D2, H*W)

    # D stage: out[t] = RD_L @ b_lo[t] + RD_H @ b_hi[t] as ONE batched
    # contraction per D-group (no per-slice Python loop, no sublane concat),
    # followed by a single lane-dense store of the whole block.
    rd_lo = jnp.broadcast_to(rd_ref[0][None], (TB, D, D2)).astype(f32)
    rd_hi = jnp.broadcast_to(rd_ref[1][None], (TB, D, D2)).astype(f32)
    out = jnp.einsum('tpd,tdx->tpx', rd_lo, b_lo, preferred_element_type=f32)
    out = out + jnp.einsum('tpd,tdx->tpx', rd_hi, b_hi, preferred_element_type=f32)
    out_ref[...] = out.astype(out_ref.dtype)


# -----------------------------------------------------------------------------
# Tile / VMEM selection (padding-aware, generation-aware).
# -----------------------------------------------------------------------------
def _round_up(x, m):
    return ((x + m - 1) // m) * m


def _vmem_limits():
    """(vmem_limit_bytes, tile_budget_bytes) derived from the chip generation."""
    cap = None
    try:
        info = pltpu.get_tpu_info()
        cap = getattr(info, "vmem_capacity_bytes", None)
    except Exception:
        cap = None
    if cap is None:
        cap = 64 * 1024 * 1024                       # conservative (v7x-sized)
    if cap >= 100 * 1024 * 1024:                     # v5e / v6e: 128 MiB VMEM
        limit = 96 * 1024 * 1024
    else:                                            # v7x: 64 MiB physical
        limit = 40 * 1024 * 1024
    return limit, int(limit * 0.75)


def _pick_batch_tile(nb, d2, k, d_out, hw, itemsize, vmem_budget_bytes):
    """Largest divisor of nb whose padded VMEM footprint fits the budget.

    Prefers an even number of grid steps >= 4 (equal split across v7x's two
    TensorCores + pipeline overlap); falls back to >= 2 steps, then max fit.
    """
    band_tile = _round_up(d2, 8) * _round_up(k, 128) * itemsize
    out_tile = _round_up(d_out, 8) * _round_up(hw, 128) * itemsize
    inter_f32 = (2 * _round_up(d2, 8) + 2 * _round_up(d_out, 8)) * _round_up(hw, 128) * 4
    per_tb = 8 * 2 * band_tile + 2 * out_tile + 2 * inter_f32
    fixed = 2 * 4 * _round_up(k, 8) * _round_up(hw, 128) * 4   # G, double buffered
    budget = max(vmem_budget_bytes - fixed, per_tb)

    divisors = [t for t in range(1, nb + 1) if nb % t == 0]
    fitting = [t for t in divisors if t * per_tb <= budget] or [1]
    best4 = [t for t in fitting if (nb // t) >= 4 and (nb // t) % 2 == 0]
    best2 = [t for t in fitting if (nb // t) >= 2]
    if best4:
        return max(best4)
    if best2:
        return max(best2)
    return max(fitting)


# -----------------------------------------------------------------------------
# Wrapper.
# -----------------------------------------------------------------------------
def idwt_3d(LLL, LLH, LHL, LHH, HLL, HLH, HHL, HHH, wave_name='haar'):
    # TODO(synk): only the Haar / 'bior1.1' filter bank is embedded in-script.
    assert wave_name in ('haar', 'bior1.1')
    bands_5d = (LLL, LLH, LHL, LHH, HLL, HLH, HHL, HHH)
    shapes = {tuple(b.shape) for b in bands_5d}
    assert len(shapes) == 1 and LLL.ndim == 5, \
        "all 8 sub-bands must share one 5-D shape (even D/H/W only)"
    N, C, D2, H2, W2 = LLL.shape
    D, H, W = 2 * D2, 2 * H2, 2 * W2
    K, HW = H2 * W2, H * W
    nb = N * C
    out_dtype = LLL.dtype
    itemsize = np.dtype(out_dtype).itemsize

    # TODO(synk): for H*W > 1024 the fused (H*W x H*W) operator becomes too
    #             large; such shapes need the per-axis matmul path tiled over
    #             D2 with pltpu.emit_pipeline instead.
    assert HW <= 1024, "fused H+W reconstruction gated to H*W <= 1024"

    g_np, rd_np = _fused_idwt_operators(D, H, W)
    g = jnp.asarray(g_np)      # (4, H2*W2, H*W)
    rd = jnp.asarray(rd_np)    # (2, D, D2)

    # Lane-dense band layout (metadata-only reshape of contiguous arrays).
    bands = [b.reshape(nb, D2, K) for b in bands_5d]

    vmem_limit, vmem_budget = _vmem_limits()
    TB = _pick_batch_tile(nb, D2, K, D, HW, itemsize, vmem_budget)
    grid = (nb // TB,)

    band_spec = pl.BlockSpec((TB, D2, K), lambda i: (i, 0, 0))
    g_spec = pl.BlockSpec((4, K, HW), lambda i: (0, 0, 0))
    rd_spec = pl.BlockSpec((2, D, D2), lambda i: (0, 0, 0))
    out_spec = pl.BlockSpec((TB, D, HW), lambda i: (i, 0, 0))

    flops = 2 * nb * (8 * D2 * K * HW + 2 * D * D2 * HW)
    bytes_accessed = (itemsize * nb * (8 * D2 * K + D * HW)
                      + 4 * (4 * K * HW + 2 * D * D2))
    cost = pl.CostEstimate(flops=flops, transcendentals=0,
                           bytes_accessed=bytes_accessed)

    out = pl.pallas_call(
        _idwt3d_kernel,
        out_shape=jax.ShapeDtypeStruct((nb, D, HW), out_dtype),
        grid_spec=pltpu.PrefetchScalarGridSpec(
            num_scalar_prefetch=0,
            grid=grid,
            in_specs=[band_spec] * 8 + [g_spec, rd_spec],
            out_specs=out_spec,
        ),
        compiler_params=pltpu.CompilerParams(
            dimension_semantics=("parallel",),
            vmem_limit_bytes=vmem_limit,
        ),
        cost_estimate=cost,
    )(*bands, g, rd)

    return out.reshape(N, C, D, H, W)


# -----------------------------------------------------------------------------
# Pure-JAX reference (independent formulation) for verification.
# -----------------------------------------------------------------------------
def idwt_3d_reference(LLL, LLH, LHL, LHH, HLL, HLH, HHL, HHH):
    N, C, D2, H2, W2 = LLL.shape
    D, H, W = 2 * D2, 2 * H2, 2 * W2
    (m_low_0, m_low_1, m_low_2,
     m_high_0, m_high_1, m_high_2) = _idwt3d_matrices(D, H, W)
    rd = {'L': jnp.asarray(m_low_2.T), 'H': jnp.asarray(m_high_2.T)}   # (D, D2)
    rh = {'L': jnp.asarray(m_low_0.T), 'H': jnp.asarray(m_high_0.T)}   # (H, H2)
    rw = {'L': jnp.asarray(m_low_1.T), 'H': jnp.asarray(m_high_1.T)}   # (W2, W)
    bands = {'LLL': LLL, 'LLH': LLH, 'LHL': LHL, 'LHH': LHH,
             'HLL': HLL, 'HLH': HLH, 'HHL': HHL, 'HHH': HHH}
    out = jnp.zeros((N, C, D, H, W), jnp.float32)
    for name, s in bands.items():
        a, b, c = name[0], name[1], name[2]
        out = out + jnp.einsum('pd,qh,kr,ncdhk->ncpqr',
                               rd[a], rh[b], rw[c], s)
    return out


if __name__ == "__main__":
    key = jax.random.PRNGKey(0)
    N, C, D, H, W = 2, 4, 16, 16, 16
    D2, H2, W2 = D // 2, H // 2, W // 2
    keys = jax.random.split(key, 8)
    sub_bands = [jax.random.normal(k, (N, C, D2, H2, W2), jnp.float32)
                 for k in keys]

    out = idwt_3d(*sub_bands)
    out = jax.block_until_ready(out)

    ref = idwt_3d_reference(*sub_bands)
    assert out.shape == (N, C, D, H, W)
    assert out.dtype == jnp.float32
    if not np.allclose(np.asarray(out), np.asarray(ref), rtol=1e-4, atol=1e-4):
        raise AssertionError("Pallas IDWT_3D output mismatches reference")
    print("KERNEL_OK")
</pallas_src>

<mosaic_0001>
module attributes {stable_mosaic.version = 11 : i64} {
  func.func @_idwt3d_kernel(%arg0: i32, %arg1: memref<2x8x64xf32, #tpu.memory_space<vmem>>, %arg2: memref<2x8x64xf32, #tpu.memory_space<vmem>>, %arg3: memref<2x8x64xf32, #tpu.memory_space<vmem>>, %arg4: memref<2x8x64xf32, #tpu.memory_space<vmem>>, %arg5: memref<2x8x64xf32, #tpu.memory_space<vmem>>, %arg6: memref<2x8x64xf32, #tpu.memory_space<vmem>>, %arg7: memref<2x8x64xf32, #tpu.memory_space<vmem>>, %arg8: memref<2x8x64xf32, #tpu.memory_space<vmem>>, %arg9: memref<4x64x256xf32, #tpu.memory_space<vmem>>, %arg10: memref<2x16x8xf32, #tpu.memory_space<vmem>>, %arg11: memref<2x16x256xf32, #tpu.memory_space<vmem>>) attributes {dimension_semantics = [#tpu.dimension_semantics<parallel>], iteration_bounds = array<i64: 4>, scalar_prefetch = 0 : i64, scratch_operands = 0 : i64, tpu.core_type = #tpu.core_type<tc>, window_params = [{transform_indices = @transform_0, window_bounds = array<i64: 2, 8, 64>}, {transform_indices = @transform_1, window_bounds = array<i64: 2, 8, 64>}, {transform_indices = @transform_2, window_bounds = array<i64: 2, 8, 64>}, {transform_indices = @transform_3, window_bounds = array<i64: 2, 8, 64>}, {transform_indices = @transform_4, window_bounds = array<i64: 2, 8, 64>}, {transform_indices = @transform_5, window_bounds = array<i64: 2, 8, 64>}, {transform_indices = @transform_6, window_bounds = array<i64: 2, 8, 64>}, {transform_indices = @transform_7, window_bounds = array<i64: 2, 8, 64>}, {pipeline_mode = #tpu.pipeline_mode<synchronous>, transform_indices = @transform_8, window_bounds = array<i64: 4, 64, 256>}, {pipeline_mode = #tpu.pipeline_mode<synchronous>, transform_indices = @transform_9, window_bounds = array<i64: 2, 16, 8>}, {transform_indices = @transform_10, window_bounds = array<i64: 2, 16, 256>}]} {
    %c0 = arith.constant 0 : index
    %c0_0 = arith.constant 0 : index
    %c0_1 = arith.constant 0 : index
    %0 = vector.load %arg1[%c0, %c0_0, %c0_1] : memref<2x8x64xf32, #tpu.memory_space<vmem>>, vector<2x8x64xf32>
    %1 = vector.shape_cast %0 : vector<2x8x64xf32> to vector<16x64xf32>
    %c0_2 = arith.constant 0 : index
    %c0_3 = arith.constant 0 : index
    %c0_4 = arith.constant 0 : index
    %2 = vector.load %arg9[%c0_2, %c0_3, %c0_4] : memref<4x64x256xf32, #tpu.memory_space<vmem>>, vector<1x64x256xf32>
    %3 = vector.shape_cast %2 : vector<1x64x256xf32> to vector<64x256xf32>
    %cst = arith.constant dense<0.000000e+00> : vector<16x256xf32>
    %4 = tpu.matmul %1, %3, %cst {dimension_numbers = #tpu.dot_dimension_numbers<[1], [0], [0], [1], [0, 0, 1, 1], [], []>} : vector<16x64xf32>, vector<64x256xf32>, vector<16x256xf32> -> vector<16x256xf32>
    %c0_5 = arith.constant 0 : index
    %c0_6 = arith.constant 0 : index
    %c0_7 = arith.constant 0 : index
    %5 = vector.load %arg2[%c0_5, %c0_6, %c0_7] : memref<2x8x64xf32, #tpu.memory_space<vmem>>, vector<2x8x64xf32>
    %6 = vector.shape_cast %5 : vector<2x8x64xf32> to vector<16x64xf32>
    %c1 = arith.constant 1 : index
    %c0_8 = arith.constant 0 : index
    %c0_9 = arith.constant 0 : index
    %7 = vector.load %arg9[%c1, %c0_8, %c0_9] : memref<4x64x256xf32, #tpu.memory_space<vmem>>, vector<1x64x256xf32>
    %8 = vector.shape_cast %7 : vector<1x64x256xf32> to vector<64x256xf32>
    %cst_10 = arith.constant dense<0.000000e+00> : vector<16x256xf32>
    %9 = tpu.matmul %6, %8, %cst_10 {dimension_numbers = #tpu.dot_dimension_numbers<[1], [0], [0], [1], [0, 0, 1, 1], [], []>} : vector<16x64xf32>, vector<64x256xf32>, vector<16x256xf32> -> vector<16x256xf32>
    %10 = arith.addf %4, %9 : vector<16x256xf32>
    %c0_11 = arith.constant 0 : index
    %c0_12 = arith.constant 0 : index
    %c0_13 = arith.constant 0 : index
    %11 = vector.load %arg3[%c0_11, %c0_12, %c0_13] : memref<2x8x64xf32, #tpu.memory_space<vmem>>, vector<2x8x64xf32>
    %12 = vector.shape_cast %11 : vector<2x8x64xf32> to vector<16x64xf32>
    %c2 = arith.constant 2 : index
    %c0_14 = arith.constant 0 : index
    %c0_15 = arith.constant 0 : index
    %13 = vector.load %arg9[%c2, %c0_14, %c0_15] : memref<4x64x256xf32, #tpu.memory_space<vmem>>, vector<1x64x256xf32>
    %14 = vector.shape_cast %13 : vector<1x64x256xf32> to vector<64x256xf32>
    %cst_16 = arith.constant dense<0.000000e+00> : vector<16x256xf32>
    %15 = tpu.matmul %12, %14, %cst_16 {dimension_numbers = #tpu.dot_dimension_numbers<[1], [0], [0], [1], [0, 0, 1, 1], [], []>} : vector<16x64xf32>, vector<64x256xf32>, vector<16x256xf32> -> vector<16x256xf32>
    %16 = arith.addf %10, %15 : vector<16x256xf32>
    %c0_17 = arith.constant 0 : index
    %c0_18 = arith.constant 0 : index
    %c0_19 = arith.constant 0 : index
    %17 = vector.load %arg4[%c0_17, %c0_18, %c0_19] : memref<2x8x64xf32, #tpu.memory_space<vmem>>, vector<2x8x64xf32>
    %18 = vector.shape_cast %17 : vector<2x8x64xf32> to vector<16x64xf32>
    %c3 = arith.constant 3 : index
    %c0_20 = arith.constant 0 : index
    %c0_21 = arith.constant 0 : index
    %19 = vector.load %arg9[%c3, %c0_20, %c0_21] : memref<4x64x256xf32, #tpu.memory_space<vmem>>, vector<1x64x256xf32>
    %20 = vector.shape_cast %19 : vector<1x64x256xf32> to vector<64x256xf32>
    %cst_22 = arith.constant dense<0.000000e+00> : vector<16x256xf32>
    %21 = tpu.matmul %18, %20, %cst_22 {dimension_numbers = #tpu.dot_dimension_numbers<[1], [0], [0], [1], [0, 0, 1, 1], [], []>} : vector<16x64xf32>, vector<64x256xf32>, vector<16x256xf32> -> vector<16x256xf32>
    %22 = arith.addf %16, %21 : vector<16x256xf32>
    %23 = vector.shape_cast %22 : vector<16x256xf32> to vector<2x8x256xf32>
    %c0_23 = arith.constant 0 : index
    %c0_24 = arith.constant 0 : index
    %c0_25 = arith.constant 0 : index
    %24 = vector.load %arg5[%c0_23, %c0_24, %c0_25] : memref<2x8x64xf32, #tpu.memory_space<vmem>>, vector<2x8x64xf32>
    %25 = vector.shape_cast %24 : vector<2x8x64xf32> to vector<16x64xf32>
    %c0_26 = arith.constant 0 : index
    %c0_27 = arith.constant 0 : index
    %c0_28 = arith.constant 0 : index
    %26 = vector.load %arg9[%c0_26, %c0_27, %c0_28] : memref<4x64x256xf32, #tpu.memory_space<vmem>>, vector<1x64x256xf32>
    %27 = vector.shape_cast %26 : vector<1x64x256xf32> to vector<64x256xf32>
    %cst_29 = arith.constant dense<0.000000e+00> : vector<16x256xf32>
    %28 = tpu.matmul %25, %27, %cst_29 {dimension_numbers = #tpu.dot_dimension_numbers<[1], [0], [0], [1], [0, 0, 1, 1], [], []>} : vector<16x64xf32>, vector<64x256xf32>, vector<16x256xf32> -> vector<16x256xf32>
    %c0_30 = arith.constant 0 : index
    %c0_31 = arith.constant 0 : index
    %c0_32 = arith.constant 0 : index
    %29 = vector.load %arg6[%c0_30, %c0_31, %c0_32] : memref<2x8x64xf32, #tpu.memory_space<vmem>>, vector<2x8x64xf32>
    %30 = vector.shape_cast %29 : vector<2x8x64xf32> to vector<16x64xf32>
    %c1_33 = arith.constant 1 : index
    %c0_34 = arith.constant 0 : index
    %c0_35 = arith.constant 0 : index
    %31 = vector.load %arg9[%c1_33, %c0_34, %c0_35] : memref<4x64x256xf32, #tpu.memory_space<vmem>>, vector<1x64x256xf32>
    %32 = vector.shape_cast %31 : vector<1x64x256xf32> to vector<64x256xf32>
    %cst_36 = arith.constant dense<0.000000e+00> : vector<16x256xf32>
    %33 = tpu.matmul %30, %32, %cst_36 {dimension_numbers = #tpu.dot_dimension_numbers<[1], [0], [0], [1], [0, 0, 1, 1], [], []>} : vector<16x64xf32>, vector<64x256xf32>, vector<16x256xf32> -> vector<16x256xf32>
    %34 = arith.addf %28, %33 : vector<16x256xf32>
    %c0_37 = arith.constant 0 : index
    %c0_38 = arith.constant 0 : index
    %c0_39 = arith.constant 0 : index
    %35 = vector.load %arg7[%c0_37, %c0_38, %c0_39] : memref<2x8x64xf32, #tpu.memory_space<vmem>>, vector<2x8x64xf32>
    %36 = vector.shape_cast %35 : vector<2x8x64xf32> to vector<16x64xf32>
    %c2_40 = arith.constant 2 : index
    %c0_41 = arith.constant 0 : index
    %c0_42 = arith.constant 0 : index
    %37 = vector.load %arg9[%c2_40, %c0_41, %c0_42] : memref<4x64x256xf32, #tpu.memory_space<vmem>>, vector<1x64x256xf32>
    %38 = vector.shape_cast %37 : vector<1x64x256xf32> to vector<64x256xf32>
    %cst_43 = arith.constant dense<0.000000e+00> : vector<16x256xf32>
    %39 = tpu.matmul %36, %38, %cst_43 {dimension_numbers = #tpu.dot_dimension_numbers<[1], [0], [0], [1], [0, 0, 1, 1], [], []>} : vector<16x64xf32>, vector<64x256xf32>, vector<16x256xf32> -> vector<16x256xf32>
    %40 = arith.addf %34, %39 : vector<16x256xf32>
    %c0_44 = arith.constant 0 : index
    %c0_45 = arith.constant 0 : index
    %c0_46 = arith.constant 0 : index
    %41 = vector.load %arg8[%c0_44, %c0_45, %c0_46] : memref<2x8x64xf32, #tpu.memory_space<vmem>>, vector<2x8x64xf32>
    %42 = vector.shape_cast %41 : vector<2x8x64xf32> to vector<16x64xf32>
    %c3_47 = arith.constant 3 : index
    %c0_48 = arith.constant 0 : index
    %c0_49 = arith.constant 0 : index
    %43 = vector.load %arg9[%c3_47, %c0_48, %c0_49] : memref<4x64x256xf32, #tpu.memory_space<vmem>>, vector<1x64x256xf32>
    %44 = vector.shape_cast %43 : vector<1x64x256xf32> to vector<64x256xf32>
    %cst_50 = arith.constant dense<0.000000e+00> : vector<16x256xf32>
    %45 = tpu.matmul %42, %44, %cst_50 {dimension_numbers = #tpu.dot_dimension_numbers<[1], [0], [0], [1], [0, 0, 1, 1], [], []>} : vector<16x64xf32>, vector<64x256xf32>, vector<16x256xf32> -> vector<16x256xf32>
    %46 = arith.addf %40, %45 : vector<16x256xf32>
    %47 = vector.shape_cast %46 : vector<16x256xf32> to vector<2x8x256xf32>
    %c0_51 = arith.constant 0 : index
    %c0_52 = arith.constant 0 : index
    %c0_53 = arith.constant 0 : index
    %48 = vector.load %arg10[%c0_51, %c0_52, %c0_53] : memref<2x16x8xf32, #tpu.memory_space<vmem>>, vector<1x16x8xf32>
    %49 = vector.shape_cast %48 : vector<1x16x8xf32> to vector<16x8xf32>
    %50 = vector.shape_cast %49 : vector<16x8xf32> to vector<1x16x8xf32>
    %51 = vector.shape_cast %50 : vector<1x16x8xf32> to vector<1x16x8xf32>
    %52 = vector.broadcast %51 : vector<1x16x8xf32> to vector<2x16x8xf32>
    %c1_54 = arith.constant 1 : index
    %c0_55 = arith.constant 0 : index
    %c0_56 = arith.constant 0 : index
    %53 = vector.load %arg10[%c1_54, %c0_55, %c0_56] : memref<2x16x8xf32, #tpu.memory_space<vmem>>, vector<1x16x8xf32>
    %54 = vector.shape_cast %53 : vector<1x16x8xf32> to vector<16x8xf32>
    %55 = vector.shape_cast %54 : vector<16x8xf32> to vector<1x16x8xf32>
    %56 = vector.shape_cast %55 : vector<1x16x8xf32> to vector<1x16x8xf32>
    %57 = vector.broadcast %56 : vector<1x16x8xf32> to vector<2x16x8xf32>
    "tpu.trace_start"() <{level = 10 : i32, message = "tpd,tdx->tpx"}> : () -> ()
    %cst_57 = arith.constant dense<0.000000e+00> : vector<2x16x256xf32>
    %58 = tpu.matmul %52, %23, %cst_57 {dimension_numbers = #tpu.dot_dimension_numbers<[2], [1], [1], [2], [0, 0, 0, 1, 1, 2], [0], [0]>} : vector<2x16x8xf32>, vector<2x8x256xf32>, vector<2x16x256xf32> -> vector<2x16x256xf32>
    %cst_58 = arith.constant dense<0.000000e+00> : vector<2x16x256xf32>
    %59 = tpu.matmul %57, %47, %cst_58 {dimension_numbers = #tpu.dot_dimension_numbers<[2], [1], [1], [2], [0, 0, 0, 1, 1, 2], [0], [0]>} : vector<2x16x8xf32>, vector<2x8x256xf32>, vector<2x16x256xf32> -> vector<2x16x256xf32>
    "tpu.trace_stop"() : () -> ()
    %60 = arith.addf %58, %59 : vector<2x16x256xf32>
    %c0_59 = arith.constant 0 : index
    %c0_60 = arith.constant 0 : index
    %c0_61 = arith.constant 0 : index
    %61 = vector.load %arg11[%c0_59, %c0_60, %c0_61] : memref<2x16x256xf32, #tpu.memory_space<vmem>>, vector<2x16x256xf32>
    tpu.vector_store %arg11[%c0_59, %c0_60, %c0_61], %60 {strides = array<i32>} : memref<2x16x256xf32, #tpu.memory_space<vmem>>, vector<2x16x256xf32>,
    return
  }
  func.func @transform_0(%arg0: i32) -> (i32, i32, i32) {
    %c0_i32 = arith.constant 0 : i32
    %c0_i32_0 = arith.constant 0 : i32
    %c0_i32_1 = arith.constant 0 : i32
    return %arg0, %c0_i32, %c0_i32_0 : i32, i32, i32
  }
  func.func @transform_1(%arg0: i32) -> (i32, i32, i32) {
    %c0_i32 = arith.constant 0 : i32
    %c0_i32_0 = arith.constant 0 : i32
    %c0_i32_1 = arith.constant 0 : i32
    return %arg0, %c0_i32, %c0_i32_0 : i32, i32, i32
  }
  func.func @transform_2(%arg0: i32) -> (i32, i32, i32) {
    %c0_i32 = arith.constant 0 : i32
    %c0_i32_0 = arith.constant 0 : i32
    %c0_i32_1 = arith.constant 0 : i32
    return %arg0, %c0_i32, %c0_i32_0 : i32, i32, i32
  }
  func.func @transform_3(%arg0: i32) -> (i32, i32, i32) {
    %c0_i32 = arith.constant 0 : i32
    %c0_i32_0 = arith.constant 0 : i32
    %c0_i32_1 = arith.constant 0 : i32
    return %arg0, %c0_i32, %c0_i32_0 : i32, i32, i32
  }
  func.func @transform_4(%arg0: i32) -> (i32, i32, i32) {
    %c0_i32 = arith.constant 0 : i32
    %c0_i32_0 = arith.constant 0 : i32
    %c0_i32_1 = arith.constant 0 : i32
    return %arg0, %c0_i32, %c0_i32_0 : i32, i32, i32
  }
  func.func @transform_5(%arg0: i32) -> (i32, i32, i32) {
    %c0_i32 = arith.constant 0 : i32
    %c0_i32_0 = arith.constant 0 : i32
    %c0_i32_1 = arith.constant 0 : i32
    return %arg0, %c0_i32, %c0_i32_0 : i32, i32, i32
  }
  func.func @transform_6(%arg0: i32) -> (i32, i32, i32) {
    %c0_i32 = arith.constant 0 : i32
    %c0_i32_0 = arith.constant 0 : i32
    %c0_i32_1 = arith.constant 0 : i32
    return %arg0, %c0_i32, %c0_i32_0 : i32, i32, i32
  }
  func.func @transform_7(%arg0: i32) -> (i32, i32, i32) {
    %c0_i32 = arith.constant 0 : i32
    %c0_i32_0 = arith.constant 0 : i32
    %c0_i32_1 = arith.constant 0 : i32
    return %arg0, %c0_i32, %c0_i32_0 : i32, i32, i32
  }
  func.func @transform_8(%arg0: i32) -> (i32, i32, i32) {
    %c0_i32 = arith.constant 0 : i32
    %c0_i32_0 = arith.constant 0 : i32
    %c0_i32_1 = arith.constant 0 : i32
    %c0_i32_2 = arith.constant 0 : i32
    return %c0_i32, %c0_i32_0, %c0_i32_1 : i32, i32, i32
  }
  func.func @transform_9(%arg0: i32) -> (i32, i32, i32) {
    %c0_i32 = arith.constant 0 : i32
    %c0_i32_0 = arith.constant 0 : i32
    %c0_i32_1 = arith.constant 0 : i32
    %c0_i32_2 = arith.constant 0 : i32
    return %c0_i32, %c0_i32_0, %c0_i32_1 : i32, i32, i32
  }
  func.func @transform_10(%arg0: i32) -> (i32, i32, i32) {
    %c0_i32 = arith.constant 0 : i32
    %c0_i32_0 = arith.constant 0 : i32
    %c0_i32_1 = arith.constant 0 : i32
    return %arg0, %c0_i32, %c0_i32_0 : i32, i32, i32
  }
}

</mosaic_0001>

<llo_original>
// kernel: tpu_custom_call.1
$region0: #{tpu_custom_call.1}
  #allocation0 [shape = 'u32[]', space=smem, size = 0x4, offset = 0x4, fixed_abs, tag = 'smem constant byte address 0x4 - core index']
  #allocation1 [shape = 'u32[144,128]{1,0:T(1,128)}', space=vmem, size = 0x12000, scoped, tag = 'internal scratch']
  %s0 = inlined_call_operand.hbm [shape: f32[8,8,64], index: 0, kind: input, shape index: {}]
  %s1 = inlined_call_operand.hbm [shape: f32[8,8,64], index: 1, kind: input, shape index: {}]
  %s2 = inlined_call_operand.hbm [shape: f32[8,8,64], index: 2, kind: input, shape index: {}]
  %s3 = inlined_call_operand.hbm [shape: f32[8,8,64], index: 3, kind: input, shape index: {}]
  %s4 = inlined_call_operand.hbm [shape: f32[8,8,64], index: 4, kind: input, shape index: {}]
  %s5 = inlined_call_operand.hbm [shape: f32[8,8,64], index: 5, kind: input, shape index: {}]
  %s6 = inlined_call_operand.hbm [shape: f32[8,8,64], index: 6, kind: input, shape index: {}]
  %s7 = inlined_call_operand.hbm [shape: f32[8,8,64], index: 7, kind: input, shape index: {}]
  %s8 = inlined_call_operand.hbm [shape: f32[4,64,256], index: 8, kind: input, shape index: {}]
  %s9 = inlined_call_operand.vmem [shape: f32[2,16,8], index: 9, kind: input, shape index: {}]
  %s10 = inlined_call_operand.hbm [shape: f32[8,16,256], index: 10, kind: output, shape index: {}]
  %s11 = sld [smem:[#allocation0]]
  $region109: #{tpu_custom_call.1} parent=0
    _
  %s13 = ssub.s32 1, %s11
  %s14 = scalar_select 0, %s13, %s11
  $region1: #{tpu_custom_call.1} parent=0
    #allocation2 [shape = 'u8[16384]{0}', space=vmem, size = 0x4000, scoped, tag = 'input window, operand 0']
    #allocation3 [shape = 's32[2]{0}', space=sflag, size = 0x8, scoped, tag = 'scoped memory for tpu_custom_call.1']
    #allocation4 [shape = 's32[2]{0}', space=sflag, size = 0x8, scoped, tag = 'scoped memory for tpu_custom_call.1']
    #allocation5 [shape = 'u8[16384]{0}', space=vmem, size = 0x4000, scoped, tag = 'input window, operand 1']
    #allocation6 [shape = 's32[2]{0}', space=sflag, size = 0x8, scoped, tag = 'scoped memory for tpu_custom_call.1']
    #allocation7 [shape = 'u8[16384]{0}', space=vmem, size = 0x4000, scoped, tag = 'input window, operand 2']
    #allocation8 [shape = 'u8[16384]{0}', space=vmem, size = 0x4000, scoped, tag = 'input window, operand 3']
    #allocation9 [shape = 's32[2]{0}', space=sflag, size = 0x8, scoped, tag = 'scoped memory for tpu_custom_call.1']
    #allocation10 [shape = 'u8[16384]{0}', space=vmem, size = 0x4000, scoped, tag = 'input window, operand 4']
    #allocation11 [shape = 'u8[16384]{0}', space=vmem, size = 0x4000, scoped, tag = 'input window, operand 5']
    #allocation12 [shape = 's32[2]{0}', space=sflag, size = 0x8, scoped, tag = 'scoped memory for tpu_custom_call.1']
    #allocation13 [shape = 'u8[16384]{0}', space=vmem, size = 0x4000, scoped, tag = 'input window, operand 6']
    #allocation14 [shape = 'u8[16384]{0}', space=vmem, size = 0x4000, scoped, tag = 'input window, operand 7']
    #allocation15 [shape = 's32[2]{0}', space=sflag, size = 0x8, scoped, tag = 'scoped memory for tpu_custom_call.1']
    #allocation16 [shape = 'u8[262144]{0}', space=vmem, size = 0x40000, scoped, tag = 'input window, operand 8, single buffered']
    #allocation17 [shape = 'u8[65536]{0}', space=vmem, size = 0x10000, scoped, tag = 'output window, operand 0']
    %15 = vsyncpa [#allocation3], 0
    %s16 = scalar_lea.sflag [#allocation3], 1
    %17 = vsyncpa %s16, 0
    %18 = vsyncpa [#allocation6], 0
    %s19 = scalar_lea.sflag [#allocation6], 1
    %20 = vsyncpa %s19, 0
    %21 = vsyncpa [#allocation9], 0
    %s22 = scalar_lea.sflag [#allocation9], 1
    %23 = vsyncpa %s22, 0
    %24 = vsyncpa [#allocation12], 0
    %s25 = scalar_lea.sflag [#allocation12], 1
    %26 = vsyncpa %s25, 0
    %27 = vsyncpa [#allocation15], 0
    %s28 = scalar_lea.sflag [#allocation15], 1
    %29 = vsyncpa %s28, 0
    %30 = vsyncpa [#allocation4], 0
    %s31 = scalar_lea.sflag [#allocation4], 1
    %32 = vsyncpa %s31, 0
    loop: start=0, step=1, limit=6
    $region2: #{tpu_custom_call.1} parent=1 // loop_pre_header
      _
    $region3: #{tpu_custom_call.1} parent=1 // loop_header
      %s34 = sphi 0, %s38
      %p35 = scmp.ge.s32.totalorder %s34, 6
      %s44 = sphi 0, %s46
      %s47 = sphi 0, %s44
      %s48 = sphi 0, %s47
      %s64 = sphi 0, %s48
      %s70 = sphi 0, %s72
      %s73 = sphi 0, %s70
      %s74 = sphi 0, %s73
      %s90 = sphi 0, %s74
      %s96 = sphi 0, %s98
      %s99 = sphi 0, %s96
      %s100 = sphi 0, %s99
      %s116 = sphi 0, %s100
      %s122 = sphi 0, %s124
      %s125 = sphi 0, %s122
      %s126 = sphi 0, %s125
      %s142 = sphi 0, %s126
      %s148 = sphi 0, %s150
      %s151 = sphi 0, %s148
      %s152 = sphi 0, %s151
      %s168 = sphi 0, %s152
      %s174 = sphi 0, %s176
      %s177 = sphi 0, %s174
      %s178 = sphi 0, %s177
      %s194 = sphi 0, %s178
      %s200 = sphi 0, %s202
      %s203 = sphi 0, %s200
      %s204 = sphi 0, %s203
      %s220 = sphi 0, %s204
      %s226 = sphi 0, %s228
      %s229 = sphi 0, %s226
      %s230 = sphi 0, %s229
      %s246 = sphi 0, %s230
      %s250 = sphi 0, %s250
      %s252 = sphi 0, %s250
      %s253 = sphi 0, %s252
      %s267 = sphi 0, %s253
      %s271 = sphi 0, %s271
      %s273 = sphi 0, %s271
      %s274 = sphi 0, %s273
      %s288 = sphi 0, %s274
      %s294 = sphi 0, %s296
      %s297 = sphi 0, %s294
      %s298 = sphi 0, %s297
      %s314 = sphi 0, %s298
    $region4: #{tpu_custom_call.1} parent=1 // loop_header_branch
      %37 = sbr.rel (%p35) target = $region8
    $region5: #{tpu_custom_call.1} parent=1 // loop_body
      %s39 = ssub.s32 %s34, 1
      %s40 = ssub.s32 %s34, 2
      %s41 = sadd.s32 %s34, 1
      %s42 = ssub.s32 %s34, %s41
      %p43 = scmp.eq.s32.totalorder %s42, 0
      %s45 = sadd.s32 %s44, 1
      %s46 = scalar_select %p43, %s44, %s45
      %p49 = pneg %p43
      %p50 = scmp.eq.s32.totalorder %s34, 3
      %p51 = por %p49, %p50
      %p52 = scmp.ne.s32.totalorder %s44, %s47
      %p53 = scmp.eq.s32.totalorder %s34, 0
      %p54 = por %p52, %p53
      %p55 = scmp.ne.s32.totalorder %s44, %s47
      %p56 = scmp.eq.s32.totalorder %s39, 3
      %p57 = por %p55, %p56
      %p58 = scmp.ne.s32.totalorder %s47, %s48
      %p59 = scmp.eq.s32.totalorder %s39, 0
      %p60 = por %p58, %p59
      %p61 = scmp.ne.s32.totalorder %s47, %s48
      %p62 = scmp.eq.s32.totalorder %s40, 3
      %p63 = por %p61, %p62
      %p65 = scmp.ne.s32.totalorder %s48, %s64
      %p66 = scmp.eq.s32.totalorder %s40, 0
      %p67 = por %p65, %p66
      %s68 = ssub.s32 %s34, %s41
      %p69 = scmp.eq.s32.totalorder %s68, 0
      %s71 = sadd.s32 %s70, 1
      %s72 = scalar_select %p69, %s70, %s71
      %p75 = pneg %p69
      %p76 = scmp.eq.s32.totalorder %s34, 3
      %p77 = por %p75, %p76
      %p78 = scmp.ne.s32.totalorder %s70, %s73
      %p79 = scmp.eq.s32.totalorder %s34, 0
      %p80 = por %p78, %p79
      %p81 = scmp.ne.s32.totalorder %s70, %s73
      %p82 = scmp.eq.s32.totalorder %s39, 3
      %p83 = por %p81, %p82
      %p84 = scmp.ne.s32.totalorder %s73, %s74
      %p85 = scmp.eq.s32.totalorder %s39, 0
      %p86 = por %p84, %p85
      %p87 = scmp.ne.s32.totalorder %s73, %s74
      %p88 = scmp.eq.s32.totalorder %s40, 3
      %p89 = por %p87, %p88
      %p91 = scmp.ne.s32.totalorder %s74, %s90
      %p92 = scmp.eq.s32.totalorder %s40, 0
      %p93 = por %p91, %p92
      %s94 = ssub.s32 %s34, %s41
      %p95 = scmp.eq.s32.totalorder %s94, 0
      %s97 = sadd.s32 %s96, 1
      %s98 = scalar_select %p95, %s96, %s97
      %p101 = pneg %p95
      %p102 = scmp.eq.s32.totalorder %s34, 3
      %p103 = por %p101, %p102
      %p104 = scmp.ne.s32.totalorder %s96, %s99
      %p105 = scmp.eq.s32.totalorder %s34, 0
      %p106 = por %p104, %p105
      %p107 = scmp.ne.s32.totalorder %s96, %s99
      %p108 = scmp.eq.s32.totalorder %s39, 3
      %p109 = por %p107, %p108
      %p110 = scmp.ne.s32.totalorder %s99, %s100
      %p111 = scmp.eq.s32.totalorder %s39, 0
      %p112 = por %p110, %p111
      %p113 = scmp.ne.s32.totalorder %s99, %s100
      %p114 = scmp.eq.s32.totalorder %s40, 3
      %p115 = por %p113, %p114
      %p117 = scmp.ne.s32.totalorder %s100, %s116
      %p118 = scmp.eq.s32.totalorder %s40, 0
      %p119 = por %p117, %p118
      %s120 = ssub.s32 %s34, %s41
      %p121 = scmp.eq.s32.totalorder %s120, 0
      %s123 = sadd.s32 %s122, 1
      %s124 = scalar_select %p121, %s122, %s123
      %p127 = pneg %p121
      %p128 = scmp.eq.s32.totalorder %s34, 3
      %p129 = por %p127, %p128
      %p130 = scmp.ne.s32.totalorder %s122, %s125
      %p131 = scmp.eq.s32.totalorder %s34, 0
      %p132 = por %p130, %p131
      %p133 = scmp.ne.s32.totalorder %s122, %s125
      %p134 = scmp.eq.s32.totalorder %s39, 3
      %p135 = por %p133, %p134
      %p136 = scmp.ne.s32.totalorder %s125, %s126
      %p137 = scmp.eq.s32.totalorder %s39, 0
      %p138 = por %p136, %p137
      %p139 = scmp.ne.s32.totalorder %s125, %s126
      %p140 = scmp.eq.s32.totalorder %s40, 3
      %p141 = por %p139, %p140
      %p143 = scmp.ne.s32.totalorder %s126, %s142
      %p144 = scmp.eq.s32.totalorder %s40, 0
      %p145 = por %p143, %p144
      %s146 = ssub.s32 %s34, %s41
      %p147 = scmp.eq.s32.totalorder %s146, 0
      %s149 = sadd.s32 %s148, 1
      %s150 = scalar_select %p147, %s148, %s149
      %p153 = pneg %p147
      %p154 = scmp.eq.s32.totalorder %s34, 3
      %p155 = por %p153, %p154
      %p156 = scmp.ne.s32.totalorder %s148, %s151
      %p157 = scmp.eq.s32.totalorder %s34, 0
      %p158 = por %p156, %p157
      %p159 = scmp.ne.s32.totalorder %s148, %s151
      %p160 = scmp.eq.s32.totalorder %s39, 3
      %p161 = por %p159, %p160
      %p162 = scmp.ne.s32.totalorder %s151, %s152
      %p163 = scmp.eq.s32.totalorder %s39, 0
      %p164 = por %p162, %p163
      %p165 = scmp.ne.s32.totalorder %s151, %s152
      %p166 = scmp.eq.s32.totalorder %s40, 3
      %p167 = por %p165, %p166
      %p169 = scmp.ne.s32.totalorder %s152, %s168
      %p170 = scmp.eq.s32.totalorder %s40, 0
      %p171 = por %p169, %p170
      %s172 = ssub.s32 %s34, %s41
      %p173 = scmp.eq.s32.totalorder %s172, 0
      %s175 = sadd.s32 %s174, 1
      %s176 = scalar_select %p173, %s174, %s175
      %p179 = pneg %p173
      %p180 = scmp.eq.s32.totalorder %s34, 3
      %p181 = por %p179, %p180
      %p182 = scmp.ne.s32.totalorder %s174, %s177
      %p183 = scmp.eq.s32.totalorder %s34, 0
      %p184 = por %p182, %p183
      %p185 = scmp.ne.s32.totalorder %s174, %s177
      %p186 = scmp.eq.s32.totalorder %s39, 3
      %p187 = por %p185, %p186
      %p188 = scmp.ne.s32.totalorder %s177, %s178
      %p189 = scmp.eq.s32.totalorder %s39, 0
      %p190 = por %p188, %p189
      %p191 = scmp.ne.s32.totalorder %s177, %s178
      %p192 = scmp.eq.s32.totalorder %s40, 3
      %p193 = por %p191, %p192
      %p195 = scmp.ne.s32.totalorder %s178, %s194
      %p196 = scmp.eq.s32.totalorder %s40, 0
      %p197 = por %p195, %p196
      %s198 = ssub.s32 %s34, %s41
      %p199 = scmp.eq.s32.totalorder %s198, 0
      %s201 = sadd.s32 %s200, 1
      %s202 = scalar_select %p199, %s200, %s201
      %p205 = pneg %p199
      %p206 = scmp.eq.s32.totalorder %s34, 3
      %p207 = por %p205, %p206
      %p208 = scmp.ne.s32.totalorder %s200, %s203
      %p209 = scmp.eq.s32.totalorder %s34, 0
      %p210 = por %p208, %p209
      %p211 = scmp.ne.s32.totalorder %s200, %s203
      %p212 = scmp.eq.s32.totalorder %s39, 3
      %p213 = por %p211, %p212
      %p214 = scmp.ne.s32.totalorder %s203, %s204
      %p215 = scmp.eq.s32.totalorder %s39, 0
      %p216 = por %p214, %p215
      %p217 = scmp.ne.s32.totalorder %s203, %s204
      %p218 = scmp.eq.s32.totalorder %s40, 3
      %p219 = por %p217, %p218
      %p221 = scmp.ne.s32.totalorder %s204, %s220
      %p222 = scmp.eq.s32.totalorder %s40, 0
      %p223 = por %p221, %p222
      %s224 = ssub.s32 %s34, %s41
      %p225 = scmp.eq.s32.totalorder %s224, 0
      %s227 = sadd.s32 %s226, 1
      %s228 = scalar_select %p225, %s226, %s227
      %p231 = pneg %p225
      %p232 = scmp.eq.s32.totalorder %s34, 3
      %p233 = por %p231, %p232
      %p234 = scmp.ne.s32.totalorder %s226, %s229
      %p235 = scmp.eq.s32.totalorder %s34, 0
      %p236 = por %p234, %p235
      %p237 = scmp.ne.s32.totalorder %s226, %s229
      %p238 = scmp.eq.s32.totalorder %s39, 3
      %p239 = por %p237, %p238
      %p240 = scmp.ne.s32.totalorder %s229, %s230
      %p241 = scmp.eq.s32.totalorder %s39, 0
      %p242 = por %p240, %p241
      %p243 = scmp.ne.s32.totalorder %s229, %s230
      %p244 = scmp.eq.s32.totalorder %s40, 3
      %p245 = por %p243, %p244
      %p247 = scmp.ne.s32.totalorder %s230, %s246
      %p248 = scmp.eq.s32.totalorder %s40, 0
      %p249 = por %p247, %p248
      %s251 = sadd.s32 %s250, 1
      %p254 = scmp.eq.s32.totalorder %s34, 3
      %p255 = scmp.ne.s32.totalorder %s250, %s252
      %p256 = scmp.eq.s32.totalorder %s34, 0
      %p257 = por %p255, %p256
      %p258 = scmp.ne.s32.totalorder %s250, %s252
      %p259 = scmp.eq.s32.totalorder %s39, 3
      %p260 = por %p258, %p259
      %p261 = scmp.ne.s32.totalorder %s252, %s253
      %p262 = scmp.eq.s32.totalorder %s39, 0
      %p263 = por %p261, %p262
      %p264 = scmp.ne.s32.totalorder %s252, %s253
      %p265 = scmp.eq.s32.totalorder %s40, 3
      %p266 = por %p264, %p265
      %p268 = scmp.ne.s32.totalorder %s253, %s267
      %p269 = scmp.eq.s32.totalorder %s40, 0
      %p270 = por %p268, %p269
      %s272 = sadd.s32 %s271, 1
      %p275 = scmp.eq.s32.totalorder %s34, 3
      %p276 = scmp.ne.s32.totalorder %s271, %s273
      %p277 = scmp.eq.s32.totalorder %s34, 0
      %p278 = por %p276, %p277
      %p279 = scmp.ne.s32.totalorder %s271, %s273
      %p280 = scmp.eq.s32.totalorder %s39, 3
      %p281 = por %p279, %p280
      %p282 = scmp.ne.s32.totalorder %s273, %s274
      %p283 = scmp.eq.s32.totalorder %s39, 0
      %p284 = por %p282, %p283
      %p285 = scmp.ne.s32.totalorder %s273, %s274
      %p286 = scmp.eq.s32.totalorder %s40, 3
      %p287 = por %p285, %p286
      %p289 = scmp.ne.s32.totalorder %s274, %s288
      %p290 = scmp.eq.s32.totalorder %s40, 0
      %p291 = por %p289, %p290
      %s292 = ssub.s32 %s34, %s41
      %p293 = scmp.eq.s32.totalorder %s292, 0
      %s295 = sadd.s32 %s294, 1
      %s296 = scalar_select %p293, %s294, %s295
      %p299 = pneg %p293
      %p300 = scmp.eq.s32.totalorder %s34, 3
      %p301 = por %p299, %p300
      %p302 = scmp.ne.s32.totalorder %s294, %s297
      %p303 = scmp.eq.s32.totalorder %s34, 0
      %p304 = por %p302, %p303
      %p305 = scmp.ne.s32.totalorder %s294, %s297
      %p306 = scmp.eq.s32.totalorder %s39, 3
      %p307 = por %p305, %p306
      %p308 = scmp.ne.s32.totalorder %s297, %s298
      %p309 = scmp.eq.s32.totalorder %s39, 0
      %p310 = por %p308, %p309
      %p311 = scmp.ne.s32.totalorder %s297, %s298
      %p312 = scmp.eq.s32.totalorder %s40, 3
      %p313 = por %p311, %p312
      %p315 = scmp.ne.s32.totalorder %s298, %s314
      %p316 = scmp.eq.s32.totalorder %s40, 0
      %p317 = por %p315, %p316
      %p318 = scmp.le.s32.totalorder 1, %s34
      %p319 = scmp.lt.s32.totalorder %s34, 5
      %p320 = pnand %p318, %p319
      %p321 = pneg %p320
      // Predicated region
      $region9: #{tpu_custom_call.1} parent=5 // pred_check
        _
      $region10: #{tpu_custom_call.1} parent=5 // pred_check_branch
        %323 = sbr.rel (%p320) target = $region12
      $region11: #{tpu_custom_call.1} parent=5 // pred_region
        %s324 = ssub.s32 %s34, 1
        // Predicated region
        $region13: #{tpu_custom_call.1} parent=11 // pred_check
          %p325 = pneg %p263
        $region14: #{tpu_custom_call.1} parent=11 // pred_check_branch
          %327 = sbr.rel (%p325) target = $region16
        $region15: #{tpu_custom_call.1} parent=11 // pred_region
          %s329 = ssub.s32 8192, 8192
          %330 = vsyncadd [#allocation15], %s329
          %s331 = sshll.u32 [#allocation16], 4
          %s332 = int_to_ptr.vmem [resolvable:$true] %s331
          %337 = dma.hbm_to_vmem [thread:$0]  %s8, 8192, %s332, [#allocation15], 256, 256, 16
        $region16: #{tpu_custom_call.1} parent=11 // pred_fallthru
          _
        // Predicated region
        $region17: #{tpu_custom_call.1} parent=11 // pred_check
          %p338 = pneg %p284
        $region18: #{tpu_custom_call.1} parent=11 // pred_check_branch
          %340 = sbr.rel (%p338) target = $region20
        $region19: #{tpu_custom_call.1} parent=11 // pred_region
          _
        $region20: #{tpu_custom_call.1} parent=11 // pred_fallthru
          _
      $region12: #{tpu_custom_call.1} parent=5 // pred_fallthru
        _
      %p341 = scmp.lt.s32.totalorder %s34, 4
      // Predicated region
      $region21: #{tpu_custom_call.1} parent=5 // pred_check
        %p342 = pneg %p341
      $region22: #{tpu_custom_call.1} parent=5 // pred_check_branch
        %344 = sbr.rel (%p342) target = $region24
      $region23: #{tpu_custom_call.1} parent=5 // pred_region
        // Predicated region
        $region25: #{tpu_custom_call.1} parent=23 // pred_check
          %p345 = pneg %p54
        $region26: #{tpu_custom_call.1} parent=23 // pred_check_branch
          %347 = sbr.rel (%p345) target = $region28
        $region27: #{tpu_custom_call.1} parent=23 // pred_region
          %s348 = sand.u32 %s44, 1
          %s349 = scalar_lea.sflag [#allocation3], %s348
          %s350 = sand.u32 %s44, 1
          %s351 = smul.addr %s350, 16
          %s352 = scalar_lea.vmem [#allocation2], %s351
          %s353 = smul.u32 2, %s34
          %s355 = ssub.s32 256, 256
          %356 = vsyncadd %s349, %s355
          %s357 = smul.addr %s353, 128
          %s358 = scalar_lea.hbm %s0, %s357
          %s359 = sshll.u32 %s352, 4
          %s360 = int_to_ptr.vmem [resolvable:$true] %s359
          %365 = dma.hbm_to_vmem [thread:$0]  %s358, 256, %s360, %s349, 128, 128, 8
        $region28: #{tpu_custom_call.1} parent=23 // pred_fallthru
          _
        // Predicated region
        $region29: #{tpu_custom_call.1} parent=23 // pred_check
          %p366 = pneg %p80
        $region30: #{tpu_custom_call.1} parent=23 // pred_check_branch
          %368 = sbr.rel (%p366) target = $region32
        $region31: #{tpu_custom_call.1} parent=23 // pred_region
          %s369 = sand.u32 %s34, 1
          %s370 = scalar_lea.sflag [#allocation6], %s369
          %s371 = sand.u32 %s70, 1
          %s372 = smul.addr %s371, 16
          %s373 = scalar_lea.vmem [#allocation5], %s372
          %s374 = smul.u32 2, %s34
          %s376 = ssub.s32 256, 256
          %377 = vsyncadd %s370, %s376
          %s378 = smul.addr %s374, 128
          %s379 = scalar_lea.hbm %s1, %s378
          %s380 = sshll.u32 %s373, 4
          %s381 = int_to_ptr.vmem [resolvable:$true] %s380
          %386 = dma.hbm_to_vmem [thread:$0]  %s379, 256, %s381, %s370, 128, 128, 8
        $region32: #{tpu_custom_call.1} parent=23 // pred_fallthru
          _
        // Predicated region
        $region33: #{tpu_custom_call.1} parent=23 // pred_check
          %p387 = pneg %p106
        $region34: #{tpu_custom_call.1} parent=23 // pred_check_branch
          %389 = sbr.rel (%p387) target = $region36
        $region35: #{tpu_custom_call.1} parent=23 // pred_region
          %s390 = sand.u32 %s34, 1
          %s391 = scalar_lea.sflag [#allocation6], %s390
          %s392 = sand.u32 %s96, 1
          %s393 = smul.addr %s392, 16
          %s394 = scalar_lea.vmem [#allocation7], %s393
          %s395 = smul.u32 2, %s34
          %s397 = ssub.s32 256, 256
          %398 = vsyncadd %s391, %s397
          %s399 = smul.addr %s395, 128
          %s400 = scalar_lea.hbm %s2, %s399
          %s401 = sshll.u32 %s394, 4
          %s402 = int_to_ptr.vmem [resolvable:$true] %s401
          %407 = dma.hbm_to_vmem [thread:$0]  %s400, 256, %s402, %s391, 128, 128, 8
        $region36: #{tpu_custom_call.1} parent=23 // pred_fallthru
          _
        // Predicated region
        $region37: #{tpu_custom_call.1} parent=23 // pred_check
          %p408 = pneg %p132
        $region38: #{tpu_custom_call.1} parent=23 // pred_check_branch
          %410 = sbr.rel (%p408) target = $region40
        $region39: #{tpu_custom_call.1} parent=23 // pred_region
          %s411 = sand.u32 %s34, 1
          %s412 = scalar_lea.sflag [#allocation9], %s411
          %s413 = sand.u32 %s122, 1
          %s414 = smul.addr %s413, 16
          %s415 = scalar_lea.vmem [#allocation8], %s414
          %s416 = smul.u32 2, %s34
          %s418 = ssub.s32 256, 256
          %419 = vsyncadd %s412, %s418
          %s420 = smul.addr %s416, 128
          %s421 = scalar_lea.hbm %s3, %s420
          %s422 = sshll.u32 %s415, 4
          %s423 = int_to_ptr.vmem [resolvable:$true] %s422
          %428 = dma.hbm_to_vmem [thread:$0]  %s421, 256, %s423, %s412, 128, 128, 8
        $region40: #{tpu_custom_call.1} parent=23 // pred_fallthru
          _
        // Predicated region
        $region41: #{tpu_custom_call.1} parent=23 // pred_check
          %p429 = pneg %p158
        $region42: #{tpu_custom_call.1} parent=23 // pred_check_branch
          %431 = sbr.rel (%p429) target = $region44
        $region43: #{tpu_custom_call.1} parent=23 // pred_region
          %s432 = sand.u32 %s34, 1
          %s433 = scalar_lea.sflag [#allocation9], %s432
          %s434 = sand.u32 %s148, 1
          %s435 = smul.addr %s434, 16
          %s436 = scalar_lea.vmem [#allocation10], %s435
          %s437 = smul.u32 2, %s34
          %s439 = ssub.s32 256, 256
          %440 = vsyncadd %s433, %s439
          %s441 = smul.addr %s437, 128
          %s442 = scalar_lea.hbm %s4, %s441
          %s443 = sshll.u32 %s436, 4
          %s444 = int_to_ptr.vmem [resolvable:$true] %s443
          %449 = dma.hbm_to_vmem [thread:$0]  %s442, 256, %s444, %s433, 128, 128, 8
        $region44: #{tpu_custom_call.1} parent=23 // pred_fallthru
          _
        // Predicated region
        $region45: #{tpu_custom_call.1} parent=23 // pred_check
          %p450 = pneg %p184
        $region46: #{tpu_custom_call.1} parent=23 // pred_check_branch
          %452 = sbr.rel (%p450) target = $region48
        $region47: #{tpu_custom_call.1} parent=23 // pred_region
          %s453 = sand.u32 %s34, 1
          %s454 = scalar_lea.sflag [#allocation12], %s453
          %s455 = sand.u32 %s174, 1
          %s456 = smul.addr %s455, 16
          %s457 = scalar_lea.vmem [#allocation11], %s456
          %s458 = smul.u32 2, %s34
          %s460 = ssub.s32 256, 256
          %461 = vsyncadd %s454, %s460
          %s462 = smul.addr %s458, 128
          %s463 = scalar_lea.hbm %s5, %s462
          %s464 = sshll.u32 %s457, 4
          %s465 = int_to_ptr.vmem [resolvable:$true] %s464
          %470 = dma.hbm_to_vmem [thread:$0]  %s463, 256, %s465, %s454, 128, 128, 8
        $region48: #{tpu_custom_call.1} parent=23 // pred_fallthru
          _
        // Predicated region
        $region49: #{tpu_custom_call.1} parent=23 // pred_check
          %p471 = pneg %p210
        $region50: #{tpu_custom_call.1} parent=23 // pred_check_branch
          %473 = sbr.rel (%p471) target = $region52
        $region51: #{tpu_custom_call.1} parent=23 // pred_region
          %s474 = sand.u32 %s34, 1
          %s475 = scalar_lea.sflag [#allocation12], %s474
          %s476 = sand.u32 %s200, 1
          %s477 = smul.addr %s476, 16
          %s478 = scalar_lea.vmem [#allocation13], %s477
          %s479 = smul.u32 2, %s34
          %s481 = ssub.s32 256, 256
          %482 = vsyncadd %s475, %s481
          %s483 = smul.addr %s479, 128
          %s484 = scalar_lea.hbm %s6, %s483
          %s485 = sshll.u32 %s478, 4
          %s486 = int_to_ptr.vmem [resolvable:$true] %s485
          %491 = dma.hbm_to_vmem [thread:$0]  %s484, 256, %s486, %s475, 128, 128, 8
        $region52: #{tpu_custom_call.1} parent=23 // pred_fallthru
          _
        // Predicated region
        $region53: #{tpu_custom_call.1} parent=23 // pred_check
          %p492 = pneg %p236
        $region54: #{tpu_custom_call.1} parent=23 // pred_check_branch
          %494 = sbr.rel (%p492) target = $region56
        $region55: #{tpu_custom_call.1} parent=23 // pred_region
          %s495 = sand.u32 %s34, 1
          %s496 = scalar_lea.sflag [#allocation15], %s495
          %s497 = sand.u32 %s226, 1
          %s498 = smul.addr %s497, 16
          %s499 = scalar_lea.vmem [#allocation14], %s498
          %s500 = smul.u32 2, %s34
          %s502 = ssub.s32 256, 256
          %503 = vsyncadd %s496, %s502
          %s504 = smul.addr %s500, 128
          %s505 = scalar_lea.hbm %s7, %s504
          %s506 = sshll.u32 %s499, 4
          %s507 = int_to_ptr.vmem [resolvable:$true] %s506
          %512 = dma.hbm_to_vmem [thread:$0]  %s505, 256, %s507, %s496, 128, 128, 8
        $region56: #{tpu_custom_call.1} parent=23 // pred_fallthru
          _
      $region24: #{tpu_custom_call.1} parent=5 // pred_fallthru
        _
      %p513 = scmp.le.s32.totalorder 1, %s34
      %p514 = scmp.lt.s32.totalorder %s34, 5
      %p515 = pnand %p513, %p514
      %p516 = pneg %p515
      // Predicated region
      $region57: #{tpu_custom_call.1} parent=5 // pred_check
        _
      $region58: #{tpu_custom_call.1} parent=5 // pred_check_branch
        %518 = sbr.rel (%p515) target = $region60
      $region59: #{tpu_custom_call.1} parent=5 // pred_region
        %s519 = ssub.s32 %s34, 1
        %s520 = sand.u32 %s47, 1
        %s521 = scalar_lea.sflag [#allocation3], %s520
        %s522 = sand.u32 %s47, 1
        %s523 = smul.addr %s522, 16
        %s524 = scalar_lea.vmem [#allocation2], %s523
        // Predicated region
        $region61: #{tpu_custom_call.1} parent=59 // pred_check
          %p525 = pneg %p60
        $region62: #{tpu_custom_call.1} parent=59 // pred_check_branch
          %527 = sbr.rel (%p525) target = $region64
        $region63: #{tpu_custom_call.1} parent=59 // pred_region
          %528 = dma.done %s521, 256
        $region64: #{tpu_custom_call.1} parent=59 // pred_fallthru
          _
        %s529 = sand.u32 %s39, 1
        %s530 = scalar_lea.sflag [#allocation6], %s529
        %s531 = sand.u32 %s73, 1
        %s532 = smul.addr %s531, 16
        %s533 = scalar_lea.vmem [#allocation5], %s532
        // Predicated region
        $region65: #{tpu_custom_call.1} parent=59 // pred_check
          %p534 = pneg %p86
        $region66: #{tpu_custom_call.1} parent=59 // pred_check_branch
          %536 = sbr.rel (%p534) target = $region68
        $region67: #{tpu_custom_call.1} parent=59 // pred_region
          %537 = dma.done %s530, 256
        $region68: #{tpu_custom_call.1} parent=59 // pred_fallthru
          _
        %s538 = sand.u32 %s39, 1
        %s539 = scalar_lea.sflag [#allocation6], %s538
        %s540 = sand.u32 %s99, 1
        %s541 = smul.addr %s540, 16
        %s542 = scalar_lea.vmem [#allocation7], %s541
        // Predicated region
        $region69: #{tpu_custom_call.1} parent=59 // pred_check
          %p543 = pneg %p112
        $region70: #{tpu_custom_call.1} parent=59 // pred_check_branch
          %545 = sbr.rel (%p543) target = $region72
        $region71: #{tpu_custom_call.1} parent=59 // pred_region
          %546 = dma.done %s539, 256
        $region72: #{tpu_custom_call.1} parent=59 // pred_fallthru
          _
        %s547 = sand.u32 %s39, 1
        %s548 = scalar_lea.sflag [#allocation9], %s547
        %s549 = sand.u32 %s125, 1
        %s550 = smul.addr %s549, 16
        %s551 = scalar_lea.vmem [#allocation8], %s550
        // Predicated region
        $region73: #{tpu_custom_call.1} parent=59 // pred_check
          %p552 = pneg %p138
        $region74: #{tpu_custom_call.1} parent=59 // pred_check_branch
          %554 = sbr.rel (%p552) target = $region76
        $region75: #{tpu_custom_call.1} parent=59 // pred_region
          %555 = dma.done %s548, 256
        $region76: #{tpu_custom_call.1} parent=59 // pred_fallthru
          _
        %s556 = sand.u32 %s39, 1
        %s557 = scalar_lea.sflag [#allocation9], %s556
        %s558 = sand.u32 %s151, 1
        %s559 = smul.addr %s558, 16
        %s560 = scalar_lea.vmem [#allocation10], %s559
        // Predicated region
        $region77: #{tpu_custom_call.1} parent=59 // pred_check
          %p561 = pneg %p164
        $region78: #{tpu_custom_call.1} parent=59 // pred_check_branch
          %563 = sbr.rel (%p561) target = $region80
        $region79: #{tpu_custom_call.1} parent=59 // pred_region
          %564 = dma.done %s557, 256
        $region80: #{tpu_custom_call.1} parent=59 // pred_fallthru
          _
        %s565 = sand.u32 %s39, 1
        %s566 = scalar_lea.sflag [#allocation12], %s565
        %s567 = sand.u32 %s177, 1
        %s568 = smul.addr %s567, 16
        %s569 = scalar_lea.vmem [#allocation11], %s568
        // Predicated region
        $region81: #{tpu_custom_call.1} parent=59 // pred_check
          %p570 = pneg %p190
        $region82: #{tpu_custom_call.1} parent=59 // pred_check_branch
          %572 = sbr.rel (%p570) target = $region84
        $region83: #{tpu_custom_call.1} parent=59 // pred_region
          %573 = dma.done %s566, 256
        $region84: #{tpu_custom_call.1} parent=59 // pred_fallthru
          _
        %s574 = sand.u32 %s39, 1
        %s575 = scalar_lea.sflag [#allocation12], %s574
        %s576 = sand.u32 %s203, 1
        %s577 = smul.addr %s576, 16
        %s578 = scalar_lea.vmem [#allocation13], %s577
        // Predicated region
        $region85: #{tpu_custom_call.1} parent=59 // pred_check
          %p579 = pneg %p216
        $region86: #{tpu_custom_call.1} parent=59 // pred_check_branch
          %581 = sbr.rel (%p579) target = $region88
        $region87: #{tpu_custom_call.1} parent=59 // pred_region
          %582 = dma.done %s575, 256
        $region88: #{tpu_custom_call.1} parent=59 // pred_fallthru
          _
        %s583 = sand.u32 %s39, 1
        %s584 = scalar_lea.sflag [#allocation15], %s583
        %s585 = sand.u32 %s229, 1
        %s586 = smul.addr %s585, 16
        %s587 = scalar_lea.vmem [#allocation14], %s586
        // Predicated region
        $region89: #{tpu_custom_call.1} parent=59 // pred_check
          %p588 = pneg %p242
        $region90: #{tpu_custom_call.1} parent=59 // pred_check_branch
          %590 = sbr.rel (%p588) target = $region92
        $region91: #{tpu_custom_call.1} parent=59 // pred_region
          %591 = dma.done %s584, 256
        $region92: #{tpu_custom_call.1} parent=59 // pred_fallthru
          _
        // Predicated region
        $region93: #{tpu_custom_call.1} parent=59 // pred_check
          %p592 = pneg %p263
        $region94: #{tpu_custom_call.1} parent=59 // pred_check_branch
          %594 = sbr.rel (%p592) target = $region96
        $region95: #{tpu_custom_call.1} parent=59 // pred_region
          %595 = dma.done [#allocation15], 8192
        $region96: #{tpu_custom_call.1} parent=59 // pred_fallthru
          _
        %s596 = sand.u32 %s47, 1
        %s597 = scalar_lea.sflag [#allocation3], %s596
        %s598 = sand.u32 %s47, 1
        %s599 = smul.addr %s598, 16
        %s600 = scalar_lea.vmem [#allocation2], %s599
        %p601 = pneg %p60
        %p602 = pneg %p57
        %s603 = sand.u32 %s39, 1
        %s604 = scalar_lea.sflag [#allocation6], %s603
        %s605 = sand.u32 %s73, 1
        %s606 = smul.addr %s605, 16
        %s607 = scalar_lea.vmem [#allocation5], %s606
        %p608 = pneg %p86
        %p609 = pneg %p83
        %s610 = sand.u32 %s39, 1
        %s611 = scalar_lea.sflag [#allocation6], %s610
        %s612 = sand.u32 %s99, 1
        %s613 = smul.addr %s612, 16
        %s614 = scalar_lea.vmem [#allocation7], %s613
        %p615 = pneg %p112
        %p616 = pneg %p109
        %s617 = sand.u32 %s39, 1
        %s618 = scalar_lea.sflag [#allocation9], %s617
        %s619 = sand.u32 %s125, 1
        %s620 = smul.addr %s619, 16
        %s621 = scalar_lea.vmem [#allocation8], %s620
        %p622 = pneg %p138
        %p623 = pneg %p135
        %s624 = sand.u32 %s39, 1
        %s625 = scalar_lea.sflag [#allocation9], %s624
        %s626 = sand.u32 %s151, 1
        %s627 = smul.addr %s626, 16
        %s628 = scalar_lea.vmem [#allocation10], %s627
        %p629 = pneg %p164
        %p630 = pneg %p161
        %s631 = sand.u32 %s39, 1
        %s632 = scalar_lea.sflag [#allocation12], %s631
        %s633 = sand.u32 %s177, 1
        %s634 = smul.addr %s633, 16
        %s635 = scalar_lea.vmem [#allocation11], %s634
        %p636 = pneg %p190
        %p637 = pneg %p187
        %s638 = sand.u32 %s39, 1
        %s639 = scalar_lea.sflag [#allocation12], %s638
        %s640 = sand.u32 %s203, 1
        %s641 = smul.addr %s640, 16
        %s642 = scalar_lea.vmem [#allocation13], %s641
        %p643 = pneg %p216
        %p644 = pneg %p213
        %s645 = sand.u32 %s39, 1
        %s646 = scalar_lea.sflag [#allocation15], %s645
        %s647 = sand.u32 %s229, 1
        %s648 = smul.addr %s647, 16
        %s649 = scalar_lea.vmem [#allocation14], %s648
        %p650 = pneg %p242
        %p651 = pneg %p239
        %p652 = pneg %p263
        %p653 = pneg %p260
        %p654 = pneg %p284
        %p655 = pneg %p281
        %p656 = pneg %p310
        %p657 = pneg %p307
        %s658 = sand.u32 %s297, 1
        %s659 = scalar_lea.sflag [#allocation4], %s658
        %s660 = sand.u32 %s297, 1
        %s661 = smul.addr %s660, 64
        %s662 = scalar_lea.vmem [#allocation17], %s661
        %s663 = smul.u32 2, %s39
        %s664 = smul.u32 2, %s39
        %s665 = smul.u32 2, %s39
        %s666 = smul.u32 2, %s39
        %s667 = smul.u32 2, %s39
        %s668 = smul.u32 2, %s39
        %s669 = smul.u32 2, %s39
        %s670 = smul.u32 2, %s39
        %s671 = smul.u32 2, %s39
        %v672 = vld [vmem:[%s524] sm:$0xff]
        %v673 = vld [vmem:[%s524 + $0x8] sm:$0xff]
        %v674 = vld [vmem:[#allocation16] sm:$0xff]
        %v675 = vld [vmem:[#allocation16 + $0x8] sm:$0xff]
        %v676 = vld [vmem:[#allocation16 + $0x10] sm:$0xff]
        %v677 = vld [vmem:[#allocation16 + $0x18] sm:$0xff]
        %v678 = vld [vmem:[#allocation16 + $0x20] sm:$0xff]
        %v679 = vld [vmem:[#allocation16 + $0x28] sm:$0xff]
        %v680 = vld [vmem:[#allocation16 + $0x30] sm:$0xff]
        %v681 = vld [vmem:[#allocation16 + $0x38] sm:$0xff]
        %v682 = vld [vmem:[#allocation16 + $0x40] sm:$0xff]
        %v683 = vld [vmem:[#allocation16 + $0x48] sm:$0xff]
        %v684 = vld [vmem:[#allocation16 + $0x50] sm:$0xff]
        %v685 = vld [vmem:[#allocation16 + $0x58] sm:$0xff]
        %v686 = vld [vmem:[#allocation16 + $0x60] sm:$0xff]
        %v687 = vld [vmem:[#allocation16 + $0x68] sm:$0xff]
        %v688 = vld [vmem:[#allocation16 + $0x70] sm:$0xff]
        %v689 = vld [vmem:[#allocation16 + $0x78] sm:$0xff]
        %v690 = vld [vmem:[%s533] sm:$0xff]
        %v691 = vld [vmem:[%s533 + $0x8] sm:$0xff]
        %s692 = scalar_lea.vmem [#allocation16], 128
        %v693 = vld [vmem:[%s692] sm:$0xff]
        %v694 = vld [vmem:[%s692 + $0x8] sm:$0xff]
        %v695 = vld [vmem:[%s692 + $0x10] sm:$0xff]
        %v696 = vld [vmem:[%s692 + $0x18] sm:$0xff]
        %v697 = vld [vmem:[%s692 + $0x20] sm:$0xff]
        %v698 = vld [vmem:[%s692 + $0x28] sm:$0xff]
        %v699 = vld [vmem:[%s692 + $0x30] sm:$0xff]
        %v700 = vld [vmem:[%s692 + $0x38] sm:$0xff]
        %v701 = vld [vmem:[%s692 + $0x40] sm:$0xff]
        %v702 = vld [vmem:[%s692 + $0x48] sm:$0xff]
        %v703 = vld [vmem:[%s692 + $0x50] sm:$0xff]
        %v704 = vld [vmem:[%s692 + $0x58] sm:$0xff]
        %v705 = vld [vmem:[%s692 + $0x60] sm:$0xff]
        %v706 = vld [vmem:[%s692 + $0x68] sm:$0xff]
        %v707 = vld [vmem:[%s692 + $0x70] sm:$0xff]
        %v708 = vld [vmem:[%s692 + $0x78] sm:$0xff]
        %vm709 = vcmask 523264
        %v711 = vsel %vm709, %v690, 0
        %v714 = vsel %vm709, %v691, 0
        %716 = vmatprep.subr.mxu0 0.0
        %717 = vmatpush1.msra.mxu0 0.0
        %718 = vmatprep.subr.mxu0 0.0
        %719 = vmatpush1.msra.mxu0 0.0
        %720 = vmatprep.subr.mxu0 0.0
        %721 = vmatpush1.msra.mxu0 0.0
        %722 = vmatprep.subr.mxu0 0.0
        %723 = vmatpush1.msra.mxu0 0.0
        %724 = vmatprep.subr.mxu0 0.0
        %725 = vmatpush1.msra.mxu0 0.0
        %726 = vmatprep.subr.mxu0 0.0
        %727 = vmatpush1.msra.mxu0 0.0
        %728 = vmatprep.subr.mxu0 0.0
        %729 = vmatpush1.msra.mxu0 0.0
        %730 = vmatprep.subr.mxu0 0.0
        %731 = vmatpush1.msra.mxu0 0.0
        %732 = vmatprep.subr.mxu0 %v708
        %733 = vmatpush1.msra.mxu0 %v707
        %734 = vmatprep.subr.mxu0 %v706
        %735 = vmatpush1.msra.mxu0 %v705
        %736 = vmatprep.subr.mxu0 %v704
        %737 = vmatpush1.msra.mxu0 %v703
        %738 = vmatprep.subr.mxu0 %v702
        %739 = vmatpush1.msra.mxu0 %v701
        %740 = vmatprep.subr.mxu0 %v700
        %741 = vmatpush1.msra.mxu0 %v699
        %742 = vmatprep.subr.mxu0 %v698
        %743 = vmatpush1.msra.mxu0 %v697
        %744 = vmatprep.subr.mxu0 %v696
        %745 = vmatpush1.msra.mxu0 %v695
        %746 = vmatprep.subr.mxu0 %v694
        %747 = vmatpush1.msra.mxu0 %v693
        %748 = vmatprep.subr.mxu0 0.0
        %749 = vmatpush2.msra.mxu0 0.0
        %750 = vmatprep.subr.mxu0 0.0
        %751 = vmatpush2.msra.mxu0 0.0
        %752 = vmatprep.subr.mxu0 0.0
        %753 = vmatpush2.msra.mxu0 0.0
        %754 = vmatprep.subr.mxu0 0.0
        %755 = vmatpush2.msra.mxu0 0.0
        %756 = vmatprep.subr.mxu0 0.0
        %757 = vmatpush2.msra.mxu0 0.0
        %758 = vmatprep.subr.mxu0 0.0
        %759 = vmatpush2.msra.mxu0 0.0
        %760 = vmatprep.subr.mxu0 0.0
        %761 = vmatpush2.msra.mxu0 0.0
        %762 = vmatprep.subr.mxu0 0.0
        %763 = vmatpush2.msra.mxu0 0.0
        %764 = vmatprep.subr.mxu0 0.0
        %765 = vmatpush2.msra.mxu0 0.0
        %766 = vmatprep.subr.mxu0 0.0
        %767 = vmatpush2.msra.mxu0 0.0
        %768 = vmatprep.subr.mxu0 0.0
        %769 = vmatpush2.msra.mxu0 0.0
        %770 = vmatprep.subr.mxu0 0.0
        %771 = vmatpush2.msra.mxu0 0.0
        %772 = vmatprep.subr.mxu0 0.0
        %773 = vmatpush2.msra.mxu0 0.0
        %774 = vmatprep.subr.mxu0 0.0
        %775 = vmatpush2.msra.mxu0 0.0
        %776 = vmatprep.subr.mxu0 0.0
        %777 = vmatpush2.msra.mxu0 0.0
        %778 = vmatprep.subr.mxu0 0.0
        %779 = vmatpush2.msra.mxu0 0.0
        %780 = vmatprep.mubr.f32.mxu0 0.0
        %781 = vmatmul.mubr.f32.gmra.mxu0 %v711
        %v782 = vpop.f32.mrf.mxu0
        %v783 = vadd.f32 0.0, %v782
        %v784 = vpop.f32.mrf.mxu0
        %v785 = vadd.f32 0.0, %v784
        %786 = vmatprep.mubr.f32.mxu0 0.0
        %787 = vmatmul.mubr.f32.gmra.mxu0 %v714
        %v788 = vpop.f32.mrf.mxu0
        %v789 = vadd.f32 0.0, %v788
        %v790 = vpop.f32.mrf.mxu0
        %v791 = vadd.f32 0.0, %v790
        %792 = vdwg.mxu0
        %v794 = vsel %vm709, %v672, 0
        %v797 = vsel %vm709, %v673, 0
        %799 = vmatprep.subr.mxu0 0.0
        %800 = vmatpush1.msra.mxu0 0.0
        %801 = vmatprep.subr.mxu0 0.0
        %802 = vmatpush1.msra.mxu0 0.0
        %803 = vmatprep.subr.mxu0 0.0
        %804 = vmatpush1.msra.mxu0 0.0
        %805 = vmatprep.subr.mxu0 0.0
        %806 = vmatpush1.msra.mxu0 0.0
        %807 = vmatprep.subr.mxu0 0.0
        %808 = vmatpush1.msra.mxu0 0.0
        %809 = vmatprep.subr.mxu0 0.0
        %810 = vmatpush1.msra.mxu0 0.0
        %811 = vmatprep.subr.mxu0 0.0
        %812 = vmatpush1.msra.mxu0 0.0
        %813 = vmatprep.subr.mxu0 0.0
        %814 = vmatpush1.msra.mxu0 0.0
        %815 = vmatprep.subr.mxu0 %v689
        %816 = vmatpush1.msra.mxu0 %v688
        %817 = vmatprep.subr.mxu0 %v687
        %818 = vmatpush1.msra.mxu0 %v686
        %819 = vmatprep.subr.mxu0 %v685
        %820 = vmatpush1.msra.mxu0 %v684
        %821 = vmatprep.subr.mxu0 %v683
        %822 = vmatpush1.msra.mxu0 %v682
        %823 = vmatprep.subr.mxu0 %v681
        %824 = vmatpush1.msra.mxu0 %v680
        %825 = vmatprep.subr.mxu0 %v679
        %826 = vmatpush1.msra.mxu0 %v678
        %827 = vmatprep.subr.mxu0 %v677
        %828 = vmatpush1.msra.mxu0 %v676
        %829 = vmatprep.subr.mxu0 %v675
        %830 = vmatpush1.msra.mxu0 %v674
        %831 = vmatprep.subr.mxu0 0.0
        %832 = vmatpush2.msra.mxu0 0.0
        %833 = vmatprep.subr.mxu0 0.0
        %834 = vmatpush2.msra.mxu0 0.0
        %835 = vmatprep.subr.mxu0 0.0
        %836 = vmatpush2.msra.mxu0 0.0
        %837 = vmatprep.subr.mxu0 0.0
        %838 = vmatpush2.msra.mxu0 0.0
        %839 = vmatprep.subr.mxu0 0.0
        %840 = vmatpush2.msra.mxu0 0.0
        %841 = vmatprep.subr.mxu0 0.0
        %842 = vmatpush2.msra.mxu0 0.0
        %843 = vmatprep.subr.mxu0 0.0
        %844 = vmatpush2.msra.mxu0 0.0
        %845 = vmatprep.subr.mxu0 0.0
        %846 = vmatpush2.msra.mxu0 0.0
        %847 = vmatprep.subr.mxu0 0.0
        %848 = vmatpush2.msra.mxu0 0.0
        %849 = vmatprep.subr.mxu0 0.0
        %850 = vmatpush2.msra.mxu0 0.0
        %851 = vmatprep.subr.mxu0 0.0
        %852 = vmatpush2.msra.mxu0 0.0
        %853 = vmatprep.subr.mxu0 0.0
        %854 = vmatpush2.msra.mxu0 0.0
        %855 = vmatprep.subr.mxu0 0.0
        %856 = vmatpush2.msra.mxu0 0.0
        %857 = vmatprep.subr.mxu0 0.0
        %858 = vmatpush2.msra.mxu0 0.0
        %859 = vmatprep.subr.mxu0 0.0
        %860 = vmatpush2.msra.mxu0 0.0
        %861 = vmatprep.subr.mxu0 0.0
        %862 = vmatpush2.msra.mxu0 0.0
        %863 = vmatprep.mubr.f32.mxu0 0.0
        %864 = vmatmul.mubr.f32.gmra.mxu0 %v794
        %v865 = vpop.f32.mrf.mxu0
        %v866 = vadd.f32 %v783, %v865
        %v867 = vpop.f32.mrf.mxu0
        %v868 = vadd.f32 %v785, %v867
        %869 = vmatprep.mubr.f32.mxu0 0.0
        %870 = vmatmul.mubr.f32.gmra.mxu0 %v797
        %v871 = vpop.f32.mrf.mxu0
        %v872 = vadd.f32 %v789, %v871
        %v873 = vpop.f32.mrf.mxu0
        %v874 = vadd.f32 %v791, %v873
        %875 = vdwg.mxu0
        %v876 = vld [vmem:[%s542] sm:$0xff]
        %v877 = vld [vmem:[%s542 + $0x8] sm:$0xff]
        %s878 = scalar_lea.vmem [#allocation16], 256
        %v879 = vld [vmem:[%s878] sm:$0xff]
        %v880 = vld [vmem:[%s878 + $0x8] sm:$0xff]
        %v881 = vld [vmem:[%s878 + $0x10] sm:$0xff]
        %v882 = vld [vmem:[%s878 + $0x18] sm:$0xff]
        %v883 = vld [vmem:[%s878 + $0x20] sm:$0xff]
        %v884 = vld [vmem:[%s878 + $0x28] sm:$0xff]
        %v885 = vld [vmem:[%s878 + $0x30] sm:$0xff]
        %v886 = vld [vmem:[%s878 + $0x38] sm:$0xff]
        %v887 = vld [vmem:[%s878 + $0x40] sm:$0xff]
        %v888 = vld [vmem:[%s878 + $0x48] sm:$0xff]
        %v889 = vld [vmem:[%s878 + $0x50] sm:$0xff]
        %v890 = vld [vmem:[%s878 + $0x58] sm:$0xff]
        %v891 = vld [vmem:[%s878 + $0x60] sm:$0xff]
        %v892 = vld [vmem:[%s878 + $0x68] sm:$0xff]
        %v893 = vld [vmem:[%s878 + $0x70] sm:$0xff]
        %v894 = vld [vmem:[%s878 + $0x78] sm:$0xff]
        %v896 = vsel %vm709, %v876, 0
        %v899 = vsel %vm709, %v877, 0
        %901 = vmatprep.subr.mxu0 0.0
        %902 = vmatpush1.msra.mxu0 0.0
        %903 = vmatprep.subr.mxu0 0.0
        %904 = vmatpush1.msra.mxu0 0.0
        %905 = vmatprep.subr.mxu0 0.0
        %906 = vmatpush1.msra.mxu0 0.0
        %907 = vmatprep.subr.mxu0 0.0
        %908 = vmatpush1.msra.mxu0 0.0
        %909 = vmatprep.subr.mxu0 0.0
        %910 = vmatpush1.msra.mxu0 0.0
        %911 = vmatprep.subr.mxu0 0.0
        %912 = vmatpush1.msra.mxu0 0.0
        %913 = vmatprep.subr.mxu0 0.0
        %914 = vmatpush1.msra.mxu0 0.0
        %915 = vmatprep.subr.mxu0 0.0
        %916 = vmatpush1.msra.mxu0 0.0
        %917 = vmatprep.subr.mxu0 %v894
        %918 = vmatpush1.msra.mxu0 %v893
        %919 = vmatprep.subr.mxu0 %v892
        %920 = vmatpush1.msra.mxu0 %v891
        %921 = vmatprep.subr.mxu0 %v890
        %922 = vmatpush1.msra.mxu0 %v889
        %923 = vmatprep.subr.mxu0 %v888
        %924 = vmatpush1.msra.mxu0 %v887
        %925 = vmatprep.subr.mxu0 %v886
        %926 = vmatpush1.msra.mxu0 %v885
        %927 = vmatprep.subr.mxu0 %v884
        %928 = vmatpush1.msra.mxu0 %v883
        %929 = vmatprep.subr.mxu0 %v882
        %930 = vmatpush1.msra.mxu0 %v881
        %931 = vmatprep.subr.mxu0 %v880
        %932 = vmatpush1.msra.mxu0 %v879
        %933 = vmatprep.subr.mxu0 0.0
        %934 = vmatpush2.msra.mxu0 0.0
        %935 = vmatprep.subr.mxu0 0.0
        %936 = vmatpush2.msra.mxu0 0.0
        %937 = vmatprep.subr.mxu0 0.0
        %938 = vmatpush2.msra.mxu0 0.0
        %939 = vmatprep.subr.mxu0 0.0
        %940 = vmatpush2.msra.mxu0 0.0
        %941 = vmatprep.subr.mxu0 0.0
        %942 = vmatpush2.msra.mxu0 0.0
        %943 = vmatprep.subr.mxu0 0.0
        %944 = vmatpush2.msra.mxu0 0.0
        %945 = vmatprep.subr.mxu0 0.0
        %946 = vmatpush2.msra.mxu0 0.0
        %947 = vmatprep.subr.mxu0 0.0
        %948 = vmatpush2.msra.mxu0 0.0
        %949 = vmatprep.subr.mxu0 0.0
        %950 = vmatpush2.msra.mxu0 0.0
        %951 = vmatprep.subr.mxu0 0.0
        %952 = vmatpush2.msra.mxu0 0.0
        %953 = vmatprep.subr.mxu0 0.0
        %954 = vmatpush2.msra.mxu0 0.0
        %955 = vmatprep.subr.mxu0 0.0
        %956 = vmatpush2.msra.mxu0 0.0
        %957 = vmatprep.subr.mxu0 0.0
        %958 = vmatpush2.msra.mxu0 0.0
        %959 = vmatprep.subr.mxu0 0.0
        %960 = vmatpush2.msra.mxu0 0.0
        %961 = vmatprep.subr.mxu0 0.0
        %962 = vmatpush2.msra.mxu0 0.0
        %963 = vmatprep.subr.mxu0 0.0
        %964 = vmatpush2.msra.mxu0 0.0
        %965 = vmatprep.mubr.f32.mxu0 0.0
        %966 = vmatmul.mubr.f32.gmra.mxu0 %v896
        %v967 = vpop.f32.mrf.mxu0
        %v968 = vadd.f32 0.0, %v967
        %v969 = vpop.f32.mrf.mxu0
        %v970 = vadd.f32 0.0, %v969
        %971 = vmatprep.mubr.f32.mxu0 0.0
        %972 = vmatmul.mubr.f32.gmra.mxu0 %v899
        %v973 = vpop.f32.mrf.mxu0
        %v974 = vadd.f32 0.0, %v973
        %v975 = vpop.f32.mrf.mxu0
        %v976 = vadd.f32 0.0, %v975
        %977 = vdwg.mxu0
        %v978 = vadd.f32 %v866, %v968
        %v979 = vadd.f32 %v868, %v970
        %v980 = vadd.f32 %v872, %v974
        %v981 = vadd.f32 %v874, %v976
        %v982 = vld [vmem:[%s551] sm:$0xff]
        %v983 = vld [vmem:[%s551 + $0x8] sm:$0xff]
        %s984 = scalar_lea.vmem [#allocation16], 384
        %v985 = vld [vmem:[%s984] sm:$0xff]
        %v986 = vld [vmem:[%s984 + $0x8] sm:$0xff]
        %v987 = vld [vmem:[%s984 + $0x10] sm:$0xff]
        %v988 = vld [vmem:[%s984 + $0x18] sm:$0xff]
        %v989 = vld [vmem:[%s984 + $0x20] sm:$0xff]
        %v990 = vld [vmem:[%s984 + $0x28] sm:$0xff]
        %v991 = vld [vmem:[%s984 + $0x30] sm:$0xff]
        %v992 = vld [vmem:[%s984 + $0x38] sm:$0xff]
        %v993 = vld [vmem:[%s984 + $0x40] sm:$0xff]
        %v994 = vld [vmem:[%s984 + $0x48] sm:$0xff]
        %v995 = vld [vmem:[%s984 + $0x50] sm:$0xff]
        %v996 = vld [vmem:[%s984 + $0x58] sm:$0xff]
        %v997 = vld [vmem:[%s984 + $0x60] sm:$0xff]
        %v998 = vld [vmem:[%s984 + $0x68] sm:$0xff]
        %v999 = vld [vmem:[%s984 + $0x70] sm:$0xff]
        %v1000 = vld [vmem:[%s984 + $0x78] sm:$0xff]
        %v1002 = vsel %vm709, %v982, 0
        %v1005 = vsel %vm709, %v983, 0
        %1007 = vmatprep.subr.mxu0 0.0
        %1008 = vmatpush1.msra.mxu0 0.0
        %1009 = vmatprep.subr.mxu0 0.0
        %1010 = vmatpush1.msra.mxu0 0.0
        %1011 = vmatprep.subr.mxu0 0.0
        %1012 = vmatpush1.msra.mxu0 0.0
        %1013 = vmatprep.subr.mxu0 0.0
        %1014 = vmatpush1.msra.mxu0 0.0
        %1015 = vmatprep.subr.mxu0 0.0
        %1016 = vmatpush1.msra.mxu0 0.0
        %1017 = vmatprep.subr.mxu0 0.0
        %1018 = vmatpush1.msra.mxu0 0.0
        %1019 = vmatprep.subr.mxu0 0.0
        %1020 = vmatpush1.msra.mxu0 0.0
        %1021 = vmatprep.subr.mxu0 0.0
        %1022 = vmatpush1.msra.mxu0 0.0
        %1023 = vmatprep.subr.mxu0 %v1000
        %1024 = vmatpush1.msra.mxu0 %v999
        %1025 = vmatprep.subr.mxu0 %v998
        %1026 = vmatpush1.msra.mxu0 %v997
        %1027 = vmatprep.subr.mxu0 %v996
        %1028 = vmatpush1.msra.mxu0 %v995
        %1029 = vmatprep.subr.mxu0 %v994
        %1030 = vmatpush1.msra.mxu0 %v993
        %1031 = vmatprep.subr.mxu0 %v992
        %1032 = vmatpush1.msra.mxu0 %v991
        %1033 = vmatprep.subr.mxu0 %v990
        %1034 = vmatpush1.msra.mxu0 %v989
        %1035 = vmatprep.subr.mxu0 %v988
        %1036 = vmatpush1.msra.mxu0 %v987
        %1037 = vmatprep.subr.mxu0 %v986
        %1038 = vmatpush1.msra.mxu0 %v985
        %1039 = vmatprep.subr.mxu0 0.0
        %1040 = vmatpush2.msra.mxu0 0.0
        %1041 = vmatprep.subr.mxu0 0.0
        %1042 = vmatpush2.msra.mxu0 0.0
        %1043 = vmatprep.subr.mxu0 0.0
        %1044 = vmatpush2.msra.mxu0 0.0
        %1045 = vmatprep.subr.mxu0 0.0
        %1046 = vmatpush2.msra.mxu0 0.0
        %1047 = vmatprep.subr.mxu0 0.0
        %1048 = vmatpush2.msra.mxu0 0.0
        %1049 = vmatprep.subr.mxu0 0.0
        %1050 = vmatpush2.msra.mxu0 0.0
        %1051 = vmatprep.subr.mxu0 0.0
        %1052 = vmatpush2.msra.mxu0 0.0
        %1053 = vmatprep.subr.mxu0 0.0
        %1054 = vmatpush2.msra.mxu0 0.0
        %1055 = vmatprep.subr.mxu0 0.0
        %1056 = vmatpush2.msra.mxu0 0.0
        %1057 = vmatprep.subr.mxu0 0.0
        %1058 = vmatpush2.msra.mxu0 0.0
        %1059 = vmatprep.subr.mxu0 0.0
        %1060 = vmatpush2.msra.mxu0 0.0
        %1061 = vmatprep.subr.mxu0 0.0
        %1062 = vmatpush2.msra.mxu0 0.0
        %1063 = vmatprep.subr.mxu0 0.0
        %1064 = vmatpush2.msra.mxu0 0.0
        %1065 = vmatprep.subr.mxu0 0.0
        %1066 = vmatpush2.msra.mxu0 0.0
        %1067 = vmatprep.subr.mxu0 0.0
        %1068 = vmatpush2.msra.mxu0 0.0
        %1069 = vmatprep.subr.mxu0 0.0
        %1070 = vmatpush2.msra.mxu0 0.0
        %1071 = vmatprep.mubr.f32.mxu0 0.0
        %1072 = vmatmul.mubr.f32.gmra.mxu0 %v1002
        %v1073 = vpop.f32.mrf.mxu0
        %v1074 = vadd.f32 0.0, %v1073
        %v1075 = vpop.f32.mrf.mxu0
        %v1076 = vadd.f32 0.0, %v1075
        %1077 = vmatprep.mubr.f32.mxu0 0.0
        %1078 = vmatmul.mubr.f32.gmra.mxu0 %v1005
        %v1079 = vpop.f32.mrf.mxu0
        %v1080 = vadd.f32 0.0, %v1079
        %v1081 = vpop.f32.mrf.mxu0
        %v1082 = vadd.f32 0.0, %v1081
        %1083 = vdwg.mxu0
        %v1084 = vadd.f32 %v978, %v1074
        %v1085 = vadd.f32 %v979, %v1076
        %v1086 = vadd.f32 %v980, %v1080
        %v1087 = vadd.f32 %v981, %v1082
        %v1088 = vld [vmem:[%s560] sm:$0xff]
        %v1089 = vld [vmem:[%s560 + $0x8] sm:$0xff]
        %v1090 = vld [vmem:[%s569] sm:$0xff]
        %v1091 = vld [vmem:[%s569 + $0x8] sm:$0xff]
        %v1093 = vsel %vm709, %v1090, 0
        %v1096 = vsel %vm709, %v1091, 0
        %1098 = vmatprep.subr.mxu0 0.0
        %1099 = vmatpush1.msra.mxu0 0.0
        %1100 = vmatprep.subr.mxu0 0.0
        %1101 = vmatpush1.msra.mxu0 0.0
        %1102 = vmatprep.subr.mxu0 0.0
        %1103 = vmatpush1.msra.mxu0 0.0
        %1104 = vmatprep.subr.mxu0 0.0
        %1105 = vmatpush1.msra.mxu0 0.0
        %1106 = vmatprep.subr.mxu0 0.0
        %1107 = vmatpush1.msra.mxu0 0.0
        %1108 = vmatprep.subr.mxu0 0.0
        %1109 = vmatpush1.msra.mxu0 0.0
        %1110 = vmatprep.subr.mxu0 0.0
        %1111 = vmatpush1.msra.mxu0 0.0
        %1112 = vmatprep.subr.mxu0 0.0
        %1113 = vmatpush1.msra.mxu0 0.0
        %1114 = vmatprep.subr.mxu0 %v708
        %1115 = vmatpush1.msra.mxu0 %v707
        %1116 = vmatprep.subr.mxu0 %v706
        %1117 = vmatpush1.msra.mxu0 %v705
        %1118 = vmatprep.subr.mxu0 %v704
        %1119 = vmatpush1.msra.mxu0 %v703
        %1120 = vmatprep.subr.mxu0 %v702
        %1121 = vmatpush1.msra.mxu0 %v701
        %1122 = vmatprep.subr.mxu0 %v700
        %1123 = vmatpush1.msra.mxu0 %v699
        %1124 = vmatprep.subr.mxu0 %v698
        %1125 = vmatpush1.msra.mxu0 %v697
        %1126 = vmatprep.subr.mxu0 %v696
        %1127 = vmatpush1.msra.mxu0 %v695
        %1128 = vmatprep.subr.mxu0 %v694
        %1129 = vmatpush1.msra.mxu0 %v693
        %1130 = vmatprep.subr.mxu0 0.0
        %1131 = vmatpush2.msra.mxu0 0.0
        %1132 = vmatprep.subr.mxu0 0.0
        %1133 = vmatpush2.msra.mxu0 0.0
        %1134 = vmatprep.subr.mxu0 0.0
        %1135 = vmatpush2.msra.mxu0 0.0
        %1136 = vmatprep.subr.mxu0 0.0
        %1137 = vmatpush2.msra.mxu0 0.0
        %1138 = vmatprep.subr.mxu0 0.0
        %1139 = vmatpush2.msra.mxu0 0.0
        %1140 = vmatprep.subr.mxu0 0.0
        %1141 = vmatpush2.msra.mxu0 0.0
        %1142 = vmatprep.subr.mxu0 0.0
        %1143 = vmatpush2.msra.mxu0 0.0
        %1144 = vmatprep.subr.mxu0 0.0
        %1145 = vmatpush2.msra.mxu0 0.0
        %1146 = vmatprep.subr.mxu0 0.0
        %1147 = vmatpush2.msra.mxu0 0.0
        %1148 = vmatprep.subr.mxu0 0.0
        %1149 = vmatpush2.msra.mxu0 0.0
        %1150 = vmatprep.subr.mxu0 0.0
        %1151 = vmatpush2.msra.mxu0 0.0
        %1152 = vmatprep.subr.mxu0 0.0
        %1153 = vmatpush2.msra.mxu0 0.0
        %1154 = vmatprep.subr.mxu0 0.0
        %1155 = vmatpush2.msra.mxu0 0.0
        %1156 = vmatprep.subr.mxu0 0.0
        %1157 = vmatpush2.msra.mxu0 0.0
        %1158 = vmatprep.subr.mxu0 0.0
        %1159 = vmatpush2.msra.mxu0 0.0
        %1160 = vmatprep.subr.mxu0 0.0
        %1161 = vmatpush2.msra.mxu0 0.0
        %1162 = vmatprep.mubr.f32.mxu0 0.0
        %1163 = vmatmul.mubr.f32.gmra.mxu0 %v1093
        %v1164 = vpop.f32.mrf.mxu0
        %v1165 = vadd.f32 0.0, %v1164
        %v1166 = vpop.f32.mrf.mxu0
        %v1167 = vadd.f32 0.0, %v1166
        %1168 = vmatprep.mubr.f32.mxu0 0.0
        %1169 = vmatmul.mubr.f32.gmra.mxu0 %v1096
        %v1170 = vpop.f32.mrf.mxu0
        %v1171 = vadd.f32 0.0, %v1170
        %v1172 = vpop.f32.mrf.mxu0
        %v1173 = vadd.f32 0.0, %v1172
        %1174 = vdwg.mxu0
        %v1176 = vsel %vm709, %v1088, 0
        %v1179 = vsel %vm709, %v1089, 0
        %1181 = vmatprep.subr.mxu0 0.0
        %1182 = vmatpush1.msra.mxu0 0.0
        %1183 = vmatprep.subr.mxu0 0.0
        %1184 = vmatpush1.msra.mxu0 0.0
        %1185 = vmatprep.subr.mxu0 0.0
        %1186 = vmatpush1.msra.mxu0 0.0
        %1187 = vmatprep.subr.mxu0 0.0
        %1188 = vmatpush1.msra.mxu0 0.0
        %1189 = vmatprep.subr.mxu0 0.0
        %1190 = vmatpush1.msra.mxu0 0.0
        %1191 = vmatprep.subr.mxu0 0.0
        %1192 = vmatpush1.msra.mxu0 0.0
        %1193 = vmatprep.subr.mxu0 0.0
        %1194 = vmatpush1.msra.mxu0 0.0
        %1195 = vmatprep.subr.mxu0 0.0
        %1196 = vmatpush1.msra.mxu0 0.0
        %1197 = vmatprep.subr.mxu0 %v689
        %1198 = vmatpush1.msra.mxu0 %v688
        %1199 = vmatprep.subr.mxu0 %v687
        %1200 = vmatpush1.msra.mxu0 %v686
        %1201 = vmatprep.subr.mxu0 %v685
        %1202 = vmatpush1.msra.mxu0 %v684
        %1203 = vmatprep.subr.mxu0 %v683
        %1204 = vmatpush1.msra.mxu0 %v682
        %1205 = vmatprep.subr.mxu0 %v681
        %1206 = vmatpush1.msra.mxu0 %v680
        %1207 = vmatprep.subr.mxu0 %v679
        %1208 = vmatpush1.msra.mxu0 %v678
        %1209 = vmatprep.subr.mxu0 %v677
        %1210 = vmatpush1.msra.mxu0 %v676
        %1211 = vmatprep.subr.mxu0 %v675
        %1212 = vmatpush1.msra.mxu0 %v674
        %1213 = vmatprep.subr.mxu0 0.0
        %1214 = vmatpush2.msra.mxu0 0.0
        %1215 = vmatprep.subr.mxu0 0.0
        %1216 = vmatpush2.msra.mxu0 0.0
        %1217 = vmatprep.subr.mxu0 0.0
        %1218 = vmatpush2.msra.mxu0 0.0
        %1219 = vmatprep.subr.mxu0 0.0
        %1220 = vmatpush2.msra.mxu0 0.0
        %1221 = vmatprep.subr.mxu0 0.0
        %1222 = vmatpush2.msra.mxu0 0.0
        %1223 = vmatprep.subr.mxu0 0.0
        %1224 = vmatpush2.msra.mxu0 0.0
        %1225 = vmatprep.subr.mxu0 0.0
        %1226 = vmatpush2.msra.mxu0 0.0
        %1227 = vmatprep.subr.mxu0 0.0
        %1228 = vmatpush2.msra.mxu0 0.0
        %1229 = vmatprep.subr.mxu0 0.0
        %1230 = vmatpush2.msra.mxu0 0.0
        %1231 = vmatprep.subr.mxu0 0.0
        %1232 = vmatpush2.msra.mxu0 0.0
        %1233 = vmatprep.subr.mxu0 0.0
        %1234 = vmatpush2.msra.mxu0 0.0
        %1235 = vmatprep.subr.mxu0 0.0
        %1236 = vmatpush2.msra.mxu0 0.0
        %1237 = vmatprep.subr.mxu0 0.0
        %1238 = vmatpush2.msra.mxu0 0.0
        %1239 = vmatprep.subr.mxu0 0.0
        %1240 = vmatpush2.msra.mxu0 0.0
        %1241 = vmatprep.subr.mxu0 0.0
        %1242 = vmatpush2.msra.mxu0 0.0
        %1243 = vmatprep.subr.mxu0 0.0
        %1244 = vmatpush2.msra.mxu0 0.0
        %1245 = vmatprep.mubr.f32.mxu0 0.0
        %1246 = vmatmul.mubr.f32.gmra.mxu0 %v1176
        %v1247 = vpop.f32.mrf.mxu0
        %v1248 = vadd.f32 %v1165, %v1247
        %v1249 = vpop.f32.mrf.mxu0
        %v1250 = vadd.f32 %v1167, %v1249
        %1251 = vmatprep.mubr.f32.mxu0 0.0
        %1252 = vmatmul.mubr.f32.gmra.mxu0 %v1179
        %v1253 = vpop.f32.mrf.mxu0
        %v1254 = vadd.f32 %v1171, %v1253
        %v1255 = vpop.f32.mrf.mxu0
        %v1256 = vadd.f32 %v1173, %v1255
        %1257 = vdwg.mxu0
        %v1258 = vld [vmem:[%s578] sm:$0xff]
        %v1259 = vld [vmem:[%s578 + $0x8] sm:$0xff]
        %v1261 = vsel %vm709, %v1258, 0
        %v1264 = vsel %vm709, %v1259, 0
        %1266 = vmatprep.subr.mxu0 0.0
        %1267 = vmatpush1.msra.mxu0 0.0
        %1268 = vmatprep.subr.mxu0 0.0
        %1269 = vmatpush1.msra.mxu0 0.0
        %1270 = vmatprep.subr.mxu0 0.0
        %1271 = vmatpush1.msra.mxu0 0.0
        %1272 = vmatprep.subr.mxu0 0.0
        %1273 = vmatpush1.msra.mxu0 0.0
        %1274 = vmatprep.subr.mxu0 0.0
        %1275 = vmatpush1.msra.mxu0 0.0
        %1276 = vmatprep.subr.mxu0 0.0
        %1277 = vmatpush1.msra.mxu0 0.0
        %1278 = vmatprep.subr.mxu0 0.0
        %1279 = vmatpush1.msra.mxu0 0.0
        %1280 = vmatprep.subr.mxu0 0.0
        %1281 = vmatpush1.msra.mxu0 0.0
        %1282 = vmatprep.subr.mxu0 %v894
        %1283 = vmatpush1.msra.mxu0 %v893
        %1284 = vmatprep.subr.mxu0 %v892
        %1285 = vmatpush1.msra.mxu0 %v891
        %1286 = vmatprep.subr.mxu0 %v890
        %1287 = vmatpush1.msra.mxu0 %v889
        %1288 = vmatprep.subr.mxu0 %v888
        %1289 = vmatpush1.msra.mxu0 %v887
        %1290 = vmatprep.subr.mxu0 %v886
        %1291 = vmatpush1.msra.mxu0 %v885
        %1292 = vmatprep.subr.mxu0 %v884
        %1293 = vmatpush1.msra.mxu0 %v883
        %1294 = vmatprep.subr.mxu0 %v882
        %1295 = vmatpush1.msra.mxu0 %v881
        %1296 = vmatprep.subr.mxu0 %v880
        %1297 = vmatpush1.msra.mxu0 %v879
        %1298 = vmatprep.subr.mxu0 0.0
        %1299 = vmatpush2.msra.mxu0 0.0
        %1300 = vmatprep.subr.mxu0 0.0
        %1301 = vmatpush2.msra.mxu0 0.0
        %1302 = vmatprep.subr.mxu0 0.0
        %1303 = vmatpush2.msra.mxu0 0.0
        %1304 = vmatprep.subr.mxu0 0.0
        %1305 = vmatpush2.msra.mxu0 0.0
        %1306 = vmatprep.subr.mxu0 0.0
        %1307 = vmatpush2.msra.mxu0 0.0
        %1308 = vmatprep.subr.mxu0 0.0
        %1309 = vmatpush2.msra.mxu0 0.0
        %1310 = vmatprep.subr.mxu0 0.0
        %1311 = vmatpush2.msra.mxu0 0.0
        %1312 = vmatprep.subr.mxu0 0.0
        %1313 = vmatpush2.msra.mxu0 0.0
        %1314 = vmatprep.subr.mxu0 0.0
        %1315 = vmatpush2.msra.mxu0 0.0
        %1316 = vmatprep.subr.mxu0 0.0
        %1317 = vmatpush2.msra.mxu0 0.0
        %1318 = vmatprep.subr.mxu0 0.0
        %1319 = vmatpush2.msra.mxu0 0.0
        %1320 = vmatprep.subr.mxu0 0.0
        %1321 = vmatpush2.msra.mxu0 0.0
        %1322 = vmatprep.subr.mxu0 0.0
        %1323 = vmatpush2.msra.mxu0 0.0
        %1324 = vmatprep.subr.mxu0 0.0
        %1325 = vmatpush2.msra.mxu0 0.0
        %1326 = vmatprep.subr.mxu0 0.0
        %1327 = vmatpush2.msra.mxu0 0.0
        %1328 = vmatprep.subr.mxu0 0.0
        %1329 = vmatpush2.msra.mxu0 0.0
        %1330 = vmatprep.mubr.f32.mxu0 0.0
        %1331 = vmatmul.mubr.f32.gmra.mxu0 %v1261
        %v1332 = vpop.f32.mrf.mxu0
        %v1333 = vadd.f32 0.0, %v1332
        %v1334 = vpop.f32.mrf.mxu0
        %v1335 = vadd.f32 0.0, %v1334
        %1336 = vmatprep.mubr.f32.mxu0 0.0
        %1337 = vmatmul.mubr.f32.gmra.mxu0 %v1264
        %v1338 = vpop.f32.mrf.mxu0
        %v1339 = vadd.f32 0.0, %v1338
        %v1340 = vpop.f32.mrf.mxu0
        %v1341 = vadd.f32 0.0, %v1340
        %1342 = vdwg.mxu0
        %v1343 = vadd.f32 %v1248, %v1333
        %v1344 = vadd.f32 %v1250, %v1335
        %v1345 = vadd.f32 %v1254, %v1339
        %v1346 = vadd.f32 %v1256, %v1341
        %v1347 = vld [vmem:[%s587] sm:$0xff]
        %v1348 = vld [vmem:[%s587 + $0x8] sm:$0xff]
        %v1350 = vsel %vm709, %v1347, 0
        %v1353 = vsel %vm709, %v1348, 0
        %1355 = vmatprep.subr.mxu0 0.0
        %1356 = vmatpush1.msra.mxu0 0.0
        %1357 = vmatprep.subr.mxu0 0.0
        %1358 = vmatpush1.msra.mxu0 0.0
        %1359 = vmatprep.subr.mxu0 0.0
        %1360 = vmatpush1.msra.mxu0 0.0
        %1361 = vmatprep.subr.mxu0 0.0
        %1362 = vmatpush1.msra.mxu0 0.0
        %1363 = vmatprep.subr.mxu0 0.0
        %1364 = vmatpush1.msra.mxu0 0.0
        %1365 = vmatprep.subr.mxu0 0.0
        %1366 = vmatpush1.msra.mxu0 0.0
        %1367 = vmatprep.subr.mxu0 0.0
        %1368 = vmatpush1.msra.mxu0 0.0
        %1369 = vmatprep.subr.mxu0 0.0
        %1370 = vmatpush1.msra.mxu0 0.0
        %1371 = vmatprep.subr.mxu0 %v1000
        %1372 = vmatpush1.msra.mxu0 %v999
        %1373 = vmatprep.subr.mxu0 %v998
        %1374 = vmatpush1.msra.mxu0 %v997
        %1375 = vmatprep.subr.mxu0 %v996
        %1376 = vmatpush1.msra.mxu0 %v995
        %1377 = vmatprep.subr.mxu0 %v994
        %1378 = vmatpush1.msra.mxu0 %v993
        %1379 = vmatprep.subr.mxu0 %v992
        %1380 = vmatpush1.msra.mxu0 %v991
        %1381 = vmatprep.subr.mxu0 %v990
        %1382 = vmatpush1.msra.mxu0 %v989
        %1383 = vmatprep.subr.mxu0 %v988
        %1384 = vmatpush1.msra.mxu0 %v987
        %1385 = vmatprep.subr.mxu0 %v986
        %1386 = vmatpush1.msra.mxu0 %v985
        %1387 = vmatprep.subr.mxu0 0.0
        %1388 = vmatpush2.msra.mxu0 0.0
        %1389 = vmatprep.subr.mxu0 0.0
        %1390 = vmatpush2.msra.mxu0 0.0
        %1391 = vmatprep.subr.mxu0 0.0
        %1392 = vmatpush2.msra.mxu0 0.0
        %1393 = vmatprep.subr.mxu0 0.0
        %1394 = vmatpush2.msra.mxu0 0.0
        %1395 = vmatprep.subr.mxu0 0.0
        %1396 = vmatpush2.msra.mxu0 0.0
        %1397 = vmatprep.subr.mxu0 0.0
        %1398 = vmatpush2.msra.mxu0 0.0
        %1399 = vmatprep.subr.mxu0 0.0
        %1400 = vmatpush2.msra.mxu0 0.0
        %1401 = vmatprep.subr.mxu0 0.0
        %1402 = vmatpush2.msra.mxu0 0.0
        %1403 = vmatprep.subr.mxu0 0.0
        %1404 = vmatpush2.msra.mxu0 0.0
        %1405 = vmatprep.subr.mxu0 0.0
        %1406 = vmatpush2.msra.mxu0 0.0
        %1407 = vmatprep.subr.mxu0 0.0
        %1408 = vmatpush2.msra.mxu0 0.0
        %1409 = vmatprep.subr.mxu0 0.0
        %1410 = vmatpush2.msra.mxu0 0.0
        %1411 = vmatprep.subr.mxu0 0.0
        %1412 = vmatpush2.msra.mxu0 0.0
        %1413 = vmatprep.subr.mxu0 0.0
        %1414 = vmatpush2.msra.mxu0 0.0
        %1415 = vmatprep.subr.mxu0 0.0
        %1416 = vmatpush2.msra.mxu0 0.0
        %1417 = vmatprep.subr.mxu0 0.0
        %1418 = vmatpush2.msra.mxu0 0.0
        %1419 = vmatprep.mubr.f32.mxu0 0.0
        %1420 = vmatmul.mubr.f32.gmra.mxu0 %v1350
        %v1421 = vpop.f32.mrf.mxu0
        %v1422 = vadd.f32 0.0, %v1421
        %v1423 = vpop.f32.mrf.mxu0
        %v1424 = vadd.f32 0.0, %v1423
        %1425 = vmatprep.mubr.f32.mxu0 0.0
        %1426 = vmatmul.mubr.f32.gmra.mxu0 %v1353
        %v1427 = vpop.f32.mrf.mxu0
        %v1428 = vadd.f32 0.0, %v1427
        %v1429 = vpop.f32.mrf.mxu0
        %v1430 = vadd.f32 0.0, %v1429
        %1431 = vdwg.mxu0
        %v1432 = vadd.f32 %v1343, %v1422
        %v1433 = vadd.f32 %v1344, %v1424
        %v1434 = vadd.f32 %v1345, %v1428
        %v1435 = vadd.f32 %v1346, %v1430
        %v1436 = vld [vmem:[%s9] sm:$0xff]
        %v1437 = vld [vmem:[%s9 + $0x8] sm:$0xff]
        %s1438 = scalar_lea.vmem %s9, 16
        %v1439 = vld [vmem:[%s1438] sm:$0xff]
        %v1440 = vld [vmem:[%s1438 + $0x8] sm:$0xff]
        %vm1441 = vcmask 64512
        %v1443 = vsel %vm1441, %v1439, 0
        %v1446 = vsel %vm1441, %v1440, 0
        %1448 = vmatprep.subr.mxu0 0.0
        %1449 = vmatpush1.msra.mxu0 0.0
        %1450 = vmatprep.subr.mxu0 0.0
        %1451 = vmatpush1.msra.mxu0 0.0
        %1452 = vmatprep.subr.mxu0 0.0
        %1453 = vmatpush1.msra.mxu0 0.0
        %1454 = vmatprep.subr.mxu0 0.0
        %1455 = vmatpush1.msra.mxu0 0.0
        %1456 = vmatprep.subr.mxu0 0.0
        %1457 = vmatpush1.msra.mxu0 0.0
        %1458 = vmatprep.subr.mxu0 0.0
        %1459 = vmatpush1.msra.mxu0 0.0
        %1460 = vmatprep.subr.mxu0 0.0
        %1461 = vmatpush1.msra.mxu0 0.0
        %1462 = vmatprep.subr.mxu0 0.0
        %1463 = vmatpush1.msra.mxu0 0.0
        %1464 = vmatprep.subr.mxu0 0.0
        %1465 = vmatpush1.msra.mxu0 0.0
        %1466 = vmatprep.subr.mxu0 0.0
        %1467 = vmatpush1.msra.mxu0 0.0
        %1468 = vmatprep.subr.mxu0 0.0
        %1469 = vmatpush1.msra.mxu0 0.0
        %1470 = vmatprep.subr.mxu0 0.0
        %1471 = vmatpush1.msra.mxu0 0.0
        %1472 = vmatprep.subr.mxu0 0.0
        %1473 = vmatpush1.msra.mxu0 0.0
        %1474 = vmatprep.subr.mxu0 0.0
        %1475 = vmatpush1.msra.mxu0 0.0
        %1476 = vmatprep.subr.mxu0 0.0
        %1477 = vmatpush1.msra.mxu0 0.0
        %1478 = vmatprep.subr.mxu0 %v1433
        %1479 = vmatpush1.msra.mxu0 %v1432
        %1480 = vmatprep.subr.mxu0 0.0
        %1481 = vmatpush2.msra.mxu0 0.0
        %1482 = vmatprep.subr.mxu0 0.0
        %1483 = vmatpush2.msra.mxu0 0.0
        %1484 = vmatprep.subr.mxu0 0.0
        %1485 = vmatpush2.msra.mxu0 0.0
        %1486 = vmatprep.subr.mxu0 0.0
        %1487 = vmatpush2.msra.mxu0 0.0
        %1488 = vmatprep.subr.mxu0 0.0
        %1489 = vmatpush2.msra.mxu0 0.0
        %1490 = vmatprep.subr.mxu0 0.0
        %1491 = vmatpush2.msra.mxu0 0.0
        %1492 = vmatprep.subr.mxu0 0.0
        %1493 = vmatpush2.msra.mxu0 0.0
        %1494 = vmatprep.subr.mxu0 0.0
        %1495 = vmatpush2.msra.mxu0 0.0
        %1496 = vmatprep.subr.mxu0 0.0
        %1497 = vmatpush2.msra.mxu0 0.0
        %1498 = vmatprep.subr.mxu0 0.0
        %1499 = vmatpush2.msra.mxu0 0.0
        %1500 = vmatprep.subr.mxu0 0.0
        %1501 = vmatpush2.msra.mxu0 0.0
        %1502 = vmatprep.subr.mxu0 0.0
        %1503 = vmatpush2.msra.mxu0 0.0
        %1504 = vmatprep.subr.mxu0 0.0
        %1505 = vmatpush2.msra.mxu0 0.0
        %1506 = vmatprep.subr.mxu0 0.0
        %1507 = vmatpush2.msra.mxu0 0.0
        %1508 = vmatprep.subr.mxu0 0.0
        %1509 = vmatpush2.msra.mxu0 0.0
        %1510 = vmatprep.subr.mxu0 0.0
        %1511 = vmatpush2.msra.mxu0 0.0
        %1512 = vmatprep.mubr.f32.mxu0 0.0
        %1513 = vmatmul.mubr.f32.gmra.mxu0 %v1443
        %v1514 = vpop.f32.mrf.mxu0
        %v1515 = vadd.f32 0.0, %v1514
        %v1516 = vpop.f32.mrf.mxu0
        %v1517 = vadd.f32 0.0, %v1516
        %1518 = vmatprep.mubr.f32.mxu0 0.0
        %1519 = vmatmul.mubr.f32.gmra.mxu0 %v1446
        %v1520 = vpop.f32.mrf.mxu0
        %v1521 = vadd.f32 0.0, %v1520
        %v1522 = vpop.f32.mrf.mxu0
        %v1523 = vadd.f32 0.0, %v1522
        %1524 = vdwg.mxu0
        %1525 = vmatprep.subr.mxu0 0.0
        %1526 = vmatpush1.msra.mxu0 0.0
        %1527 = vmatprep.subr.mxu0 0.0
        %1528 = vmatpush1.msra.mxu0 0.0
        %1529 = vmatprep.subr.mxu0 0.0
        %1530 = vmatpush1.msra.mxu0 0.0
        %1531 = vmatprep.subr.mxu0 0.0
        %1532 = vmatpush1.msra.mxu0 0.0
        %1533 = vmatprep.subr.mxu0 0.0
        %1534 = vmatpush1.msra.mxu0 0.0
        %1535 = vmatprep.subr.mxu0 0.0
        %1536 = vmatpush1.msra.mxu0 0.0
        %1537 = vmatprep.subr.mxu0 0.0
        %1538 = vmatpush1.msra.mxu0 0.0
        %1539 = vmatprep.subr.mxu0 0.0
        %1540 = vmatpush1.msra.mxu0 0.0
        %1541 = vmatprep.subr.mxu0 0.0
        %1542 = vmatpush1.msra.mxu0 0.0
        %1543 = vmatprep.subr.mxu0 0.0
        %1544 = vmatpush1.msra.mxu0 0.0
        %1545 = vmatprep.subr.mxu0 0.0
        %1546 = vmatpush1.msra.mxu0 0.0
        %1547 = vmatprep.subr.mxu0 0.0
        %1548 = vmatpush1.msra.mxu0 0.0
        %1549 = vmatprep.subr.mxu0 0.0
        %1550 = vmatpush1.msra.mxu0 0.0
        %1551 = vmatprep.subr.mxu0 0.0
        %1552 = vmatpush1.msra.mxu0 0.0
        %1553 = vmatprep.subr.mxu0 0.0
        %1554 = vmatpush1.msra.mxu0 0.0
        %1555 = vmatprep.subr.mxu0 %v1435
        %1556 = vmatpush1.msra.mxu0 %v1434
        %1557 = vmatprep.subr.mxu0 0.0
        %1558 = vmatpush2.msra.mxu0 0.0
        %1559 = vmatprep.subr.mxu0 0.0
        %1560 = vmatpush2.msra.mxu0 0.0
        %1561 = vmatprep.subr.mxu0 0.0
        %1562 = vmatpush2.msra.mxu0 0.0
        %1563 = vmatprep.subr.mxu0 0.0
        %1564 = vmatpush2.msra.mxu0 0.0
        %1565 = vmatprep.subr.mxu0 0.0
        %1566 = vmatpush2.msra.mxu0 0.0
        %1567 = vmatprep.subr.mxu0 0.0
        %1568 = vmatpush2.msra.mxu0 0.0
        %1569 = vmatprep.subr.mxu0 0.0
        %1570 = vmatpush2.msra.mxu0 0.0
        %1571 = vmatprep.subr.mxu0 0.0
        %1572 = vmatpush2.msra.mxu0 0.0
        %1573 = vmatprep.subr.mxu0 0.0
        %1574 = vmatpush2.msra.mxu0 0.0
        %1575 = vmatprep.subr.mxu0 0.0
        %1576 = vmatpush2.msra.mxu0 0.0
        %1577 = vmatprep.subr.mxu0 0.0
        %1578 = vmatpush2.msra.mxu0 0.0
        %1579 = vmatprep.subr.mxu0 0.0
        %1580 = vmatpush2.msra.mxu0 0.0
        %1581 = vmatprep.subr.mxu0 0.0
        %1582 = vmatpush2.msra.mxu0 0.0
        %1583 = vmatprep.subr.mxu0 0.0
        %1584 = vmatpush2.msra.mxu0 0.0
        %1585 = vmatprep.subr.mxu0 0.0
        %1586 = vmatpush2.msra.mxu0 0.0
        %1587 = vmatprep.subr.mxu0 0.0
        %1588 = vmatpush2.msra.mxu0 0.0
        %1589 = vmatprep.mubr.f32.mxu0 0.0
        %1590 = vmatmul.mubr.f32.gmra.mxu0 %v1443
        %v1591 = vpop.f32.mrf.mxu0
        %v1592 = vadd.f32 0.0, %v1591
        %v1593 = vpop.f32.mrf.mxu0
        %v1594 = vadd.f32 0.0, %v1593
        %1595 = vmatprep.mubr.f32.mxu0 0.0
        %1596 = vmatmul.mubr.f32.gmra.mxu0 %v1446
        %v1597 = vpop.f32.mrf.mxu0
        %v1598 = vadd.f32 0.0, %v1597
        %v1599 = vpop.f32.mrf.mxu0
        %v1600 = vadd.f32 0.0, %v1599
        %1601 = vdwg.mxu0
        %v1603 = vsel %vm1441, %v1436, 0
        %v1606 = vsel %vm1441, %v1437, 0
        %1608 = vmatprep.subr.mxu0 0.0
        %1609 = vmatpush1.msra.mxu0 0.0
        %1610 = vmatprep.subr.mxu0 0.0
        %1611 = vmatpush1.msra.mxu0 0.0
        %1612 = vmatprep.subr.mxu0 0.0
        %1613 = vmatpush1.msra.mxu0 0.0
        %1614 = vmatprep.subr.mxu0 0.0
        %1615 = vmatpush1.msra.mxu0 0.0
        %1616 = vmatprep.subr.mxu0 0.0
        %1617 = vmatpush1.msra.mxu0 0.0
        %1618 = vmatprep.subr.mxu0 0.0
        %1619 = vmatpush1.msra.mxu0 0.0
        %1620 = vmatprep.subr.mxu0 0.0
        %1621 = vmatpush1.msra.mxu0 0.0
        %1622 = vmatprep.subr.mxu0 0.0
        %1623 = vmatpush1.msra.mxu0 0.0
        %1624 = vmatprep.subr.mxu0 0.0
        %1625 = vmatpush1.msra.mxu0 0.0
        %1626 = vmatprep.subr.mxu0 0.0
        %1627 = vmatpush1.msra.mxu0 0.0
        %1628 = vmatprep.subr.mxu0 0.0
        %1629 = vmatpush1.msra.mxu0 0.0
        %1630 = vmatprep.subr.mxu0 0.0
        %1631 = vmatpush1.msra.mxu0 0.0
        %1632 = vmatprep.subr.mxu0 0.0
        %1633 = vmatpush1.msra.mxu0 0.0
        %1634 = vmatprep.subr.mxu0 0.0
        %1635 = vmatpush1.msra.mxu0 0.0
        %1636 = vmatprep.subr.mxu0 0.0
        %1637 = vmatpush1.msra.mxu0 0.0
        %1638 = vmatprep.subr.mxu0 %v1085
        %1639 = vmatpush1.msra.mxu0 %v1084
        %1640 = vmatprep.subr.mxu0 0.0
        %1641 = vmatpush2.msra.mxu0 0.0
        %1642 = vmatprep.subr.mxu0 0.0
        %1643 = vmatpush2.msra.mxu0 0.0
        %1644 = vmatprep.subr.mxu0 0.0
        %1645 = vmatpush2.msra.mxu0 0.0
        %1646 = vmatprep.subr.mxu0 0.0
        %1647 = vmatpush2.msra.mxu0 0.0
        %1648 = vmatprep.subr.mxu0 0.0
        %1649 = vmatpush2.msra.mxu0 0.0
        %1650 = vmatprep.subr.mxu0 0.0
        %1651 = vmatpush2.msra.mxu0 0.0
        %1652 = vmatprep.subr.mxu0 0.0
        %1653 = vmatpush2.msra.mxu0 0.0
        %1654 = vmatprep.subr.mxu0 0.0
        %1655 = vmatpush2.msra.mxu0 0.0
        %1656 = vmatprep.subr.mxu0 0.0
        %1657 = vmatpush2.msra.mxu0 0.0
        %1658 = vmatprep.subr.mxu0 0.0
        %1659 = vmatpush2.msra.mxu0 0.0
        %1660 = vmatprep.subr.mxu0 0.0
        %1661 = vmatpush2.msra.mxu0 0.0
        %1662 = vmatprep.subr.mxu0 0.0
        %1663 = vmatpush2.msra.mxu0 0.0
        %1664 = vmatprep.subr.mxu0 0.0
        %1665 = vmatpush2.msra.mxu0 0.0
        %1666 = vmatprep.subr.mxu0 0.0
        %1667 = vmatpush2.msra.mxu0 0.0
        %1668 = vmatprep.subr.mxu0 0.0
        %1669 = vmatpush2.msra.mxu0 0.0
        %1670 = vmatprep.subr.mxu0 0.0
        %1671 = vmatpush2.msra.mxu0 0.0
        %1672 = vmatprep.mubr.f32.mxu0 0.0
        %1673 = vmatmul.mubr.f32.gmra.mxu0 %v1603
        %v1674 = vpop.f32.mrf.mxu0
        %v1675 = vadd.f32 %v1515, %v1674
        %v1676 = vpop.f32.mrf.mxu0
        %v1677 = vadd.f32 %v1517, %v1676
        %1678 = vmatprep.mubr.f32.mxu0 0.0
        %1679 = vmatmul.mubr.f32.gmra.mxu0 %v1606
        %v1680 = vpop.f32.mrf.mxu0
        %v1681 = vadd.f32 %v1521, %v1680
        %v1682 = vpop.f32.mrf.mxu0
        %v1683 = vadd.f32 %v1523, %v1682
        %1684 = vdwg.mxu0
        %1685 = vmatprep.subr.mxu0 0.0
        %1686 = vmatpush1.msra.mxu0 0.0
        %1687 = vmatprep.subr.mxu0 0.0
        %1688 = vmatpush1.msra.mxu0 0.0
        %1689 = vmatprep.subr.mxu0 0.0
        %1690 = vmatpush1.msra.mxu0 0.0
        %1691 = vmatprep.subr.mxu0 0.0
        %1692 = vmatpush1.msra.mxu0 0.0
        %1693 = vmatprep.subr.mxu0 0.0
        %1694 = vmatpush1.msra.mxu0 0.0
        %1695 = vmatprep.subr.mxu0 0.0
        %1696 = vmatpush1.msra.mxu0 0.0
        %1697 = vmatprep.subr.mxu0 0.0
        %1698 = vmatpush1.msra.mxu0 0.0
        %1699 = vmatprep.subr.mxu0 0.0
        %1700 = vmatpush1.msra.mxu0 0.0
        %1701 = vmatprep.subr.mxu0 0.0
        %1702 = vmatpush1.msra.mxu0 0.0
        %1703 = vmatprep.subr.mxu0 0.0
        %1704 = vmatpush1.msra.mxu0 0.0
        %1705 = vmatprep.subr.mxu0 0.0
        %1706 = vmatpush1.msra.mxu0 0.0
        %1707 = vmatprep.subr.mxu0 0.0
        %1708 = vmatpush1.msra.mxu0 0.0
        %1709 = vmatprep.subr.mxu0 0.0
        %1710 = vmatpush1.msra.mxu0 0.0
        %1711 = vmatprep.subr.mxu0 0.0
        %1712 = vmatpush1.msra.mxu0 0.0
        %1713 = vmatprep.subr.mxu0 0.0
        %1714 = vmatpush1.msra.mxu0 0.0
        %1715 = vmatprep.subr.mxu0 %v1087
        %1716 = vmatpush1.msra.mxu0 %v1086
        %1717 = vmatprep.subr.mxu0 0.0
        %1718 = vmatpush2.msra.mxu0 0.0
        %1719 = vmatprep.subr.mxu0 0.0
        %1720 = vmatpush2.msra.mxu0 0.0
        %1721 = vmatprep.subr.mxu0 0.0
        %1722 = vmatpush2.msra.mxu0 0.0
        %1723 = vmatprep.subr.mxu0 0.0
        %1724 = vmatpush2.msra.mxu0 0.0
        %1725 = vmatprep.subr.mxu0 0.0
        %1726 = vmatpush2.msra.mxu0 0.0
        %1727 = vmatprep.subr.mxu0 0.0
        %1728 = vmatpush2.msra.mxu0 0.0
        %1729 = vmatprep.subr.mxu0 0.0
        %1730 = vmatpush2.msra.mxu0 0.0
        %1731 = vmatprep.subr.mxu0 0.0
        %1732 = vmatpush2.msra.mxu0 0.0
        %1733 = vmatprep.subr.mxu0 0.0
        %1734 = vmatpush2.msra.mxu0 0.0
        %1735 = vmatprep.subr.mxu0 0.0
        %1736 = vmatpush2.msra.mxu0 0.0
        %1737 = vmatprep.subr.mxu0 0.0
        %1738 = vmatpush2.msra.mxu0 0.0
        %1739 = vmatprep.subr.mxu0 0.0
        %1740 = vmatpush2.msra.mxu0 0.0
        %1741 = vmatprep.subr.mxu0 0.0
        %1742 = vmatpush2.msra.mxu0 0.0
        %1743 = vmatprep.subr.mxu0 0.0
        %1744 = vmatpush2.msra.mxu0 0.0
        %1745 = vmatprep.subr.mxu0 0.0
        %1746 = vmatpush2.msra.mxu0 0.0
        %1747 = vmatprep.subr.mxu0 0.0
        %1748 = vmatpush2.msra.mxu0 0.0
        %1749 = vmatprep.mubr.f32.mxu0 0.0
        %1750 = vmatmul.mubr.f32.gmra.mxu0 %v1603
        %v1751 = vpop.f32.mrf.mxu0
        %v1752 = vadd.f32 %v1592, %v1751
        %v1753 = vpop.f32.mrf.mxu0
        %v1754 = vadd.f32 %v1594, %v1753
        %1755 = vmatprep.mubr.f32.mxu0 0.0
        %1756 = vmatmul.mubr.f32.gmra.mxu0 %v1606
        %v1757 = vpop.f32.mrf.mxu0
        %v1758 = vadd.f32 %v1598, %v1757
        %v1759 = vpop.f32.mrf.mxu0
        %v1760 = vadd.f32 %v1600, %v1759
        %1761 = vdwg.mxu0
        %1762 = vst [vmem:[%s662] sm:$0xff] %v1675
        %1763 = vst [vmem:[%s662 + $0x8] sm:$0xff] %v1677
        %1764 = vst [vmem:[%s662 + $0x10] sm:$0xff] %v1681
        %1765 = vst [vmem:[%s662 + $0x18] sm:$0xff] %v1683
        %1766 = vst [vmem:[%s662 + $0x20] sm:$0xff] %v1752
        %1767 = vst [vmem:[%s662 + $0x28] sm:$0xff] %v1754
        %1768 = vst [vmem:[%s662 + $0x30] sm:$0xff] %v1758
        %1769 = vst [vmem:[%s662 + $0x38] sm:$0xff] %v1760
        %s1770 = sand.u32 %s297, 1
        %s1771 = scalar_lea.sflag [#allocation4], %s1770
        %s1772 = sand.u32 %s297, 1
        %s1773 = smul.addr %s1772, 64
        %s1774 = scalar_lea.vmem [#allocation17], %s1773
        // Predicated region
        $region97: #{tpu_custom_call.1} parent=59 // pred_check
          %p1775 = pneg %p307
        $region98: #{tpu_custom_call.1} parent=59 // pred_check_branch
          %1777 = sbr.rel (%p1775) target = $region100
        $region99: #{tpu_custom_call.1} parent=59 // pred_region
          %s1778 = smul.u32 2, %s39
          %s1780 = ssub.s32 1024, 1024
          %1781 = vsyncadd %s1771, %s1780
          %s1782 = smul.addr %s1778, 4
          %s1783 = smul.addr %s1782, 128
          %s1784 = scalar_lea.hbm %s10, %s1783
          %s1785 = sshll.u32 %s1774, 4
          %s1786 = int_to_ptr.vmem [resolvable:$true] %s1785
          %1791 = dma.vmem_to_hbm [thread:$0]  %s1786, 1024, %s1784, %s1771, 256, 256, 16
        $region100: #{tpu_custom_call.1} parent=59 // pred_fallthru
          _
      $region60: #{tpu_custom_call.1} parent=5 // pred_fallthru
        _
      %p1792 = scmp.le.s32.totalorder 2, %s34
      // Predicated region
      $region101: #{tpu_custom_call.1} parent=5 // pred_check
        %p1793 = pneg %p1792
      $region102: #{tpu_custom_call.1} parent=5 // pred_check_branch
        %1795 = sbr.rel (%p1793) target = $region104
      $region103: #{tpu_custom_call.1} parent=5 // pred_region
        %s1796 = ssub.s32 %s34, 2
        // Predicated region
        $region105: #{tpu_custom_call.1} parent=103 // pred_check
          %p1797 = pneg %p313
        $region106: #{tpu_custom_call.1} parent=103 // pred_check_branch
          %1799 = sbr.rel (%p1797) target = $region108
        $region107: #{tpu_custom_call.1} parent=103 // pred_region
          %s1800 = sand.u32 %s298, 1
          %s1801 = scalar_lea.sflag [#allocation4], %s1800
          %s1802 = sand.u32 %s298, 1
          %s1803 = smul.addr %s1802, 64
          %s1804 = scalar_lea.vmem [#allocation17], %s1803
          %1805 = dma.done %s1801, 1024
        $region108: #{tpu_custom_call.1} parent=103 // pred_fallthru
          _
      $region104: #{tpu_custom_call.1} parent=5 // pred_fallthru
        _
    $region6: #{tpu_custom_call.1} parent=1 // loop_footer
      %s38 = sadd.s32 1, %s34
    $region7: #{tpu_custom_call.1} parent=1 // loop_footer_branch
      %33 = sbr.rel target = $region3
    $region8: #{tpu_custom_call.1} parent=1 // loop_exit
      _
    %1806 = vsyncpa [#allocation3], 1
    %s1807 = scalar_lea.sflag [#allocation3], 1
    %1808 = vsyncpa %s1807, 1
    %1809 = vsyncpa [#allocation6], 1
    %s1810 = scalar_lea.sflag [#allocation6], 1
    %1811 = vsyncpa %s1810, 1
    %1812 = vsyncpa [#allocation9], 1
    %s1813 = scalar_lea.sflag [#allocation9], 1
    %1814 = vsyncpa %s1813, 1
    %1815 = vsyncpa [#allocation12], 1
    %s1816 = scalar_lea.sflag [#allocation12], 1
    %1817 = vsyncpa %s1816, 1
    %1818 = vsyncpa [#allocation15], 1
    %s1819 = scalar_lea.sflag [#allocation15], 1
    %1820 = vsyncpa %s1819, 1
    %1821 = vsyncpa [#allocation4], 1
    %s1822 = scalar_lea.sflag [#allocation4], 1
    %1823 = vsyncpa %s1822, 1

</llo_original>
